<compile_context>
chip_gen: v7x
topology: tpu7x:2x2x1
jax: 0.10.0
libtpu: 0.0.40
codegen_flags: <defaults>
</compile_context>

<pallas_src>
import numpy as np
import jax
import jax.numpy as jnp
from jax import lax
from jax.experimental import pallas as pl
from jax.experimental.pallas import tpu as pltpu


# ------------------------------ static geometry ------------------------------

def _layer_geometry(action, num_input, H, W):
    """Per-layer static shapes, matching the PyTorch module's padding formulas."""
    geo = []
    Cin, Hc, Wc = num_input, H, W
    for (fs, nf, pk, _dr) in action:
        for_pd = fs + 1 if fs % 2 == 0 else fs
        pc = int(for_pd / 2 - 0.5)            # conv padding
        pp = int((pk + 1) / 2 - 0.5)          # pool padding
        Hp, Wp = Hc + 2 * pc, Wc + 2 * pc     # padded conv input
        Ho, Wo = Hp - fs + 1, Wp - fs + 1     # conv output (stride 1)
        Hop = (Ho + 2 * pp - pk) // pk + 1    # pooled output (floor mode)
        Wop = (Wo + 2 * pp - pk) // pk + 1
        geo.append(dict(fs=fs, Cin=Cin, Cout=nf, Hin=Hc, Win=Wc, pc=pc, pp=pp,
                        Hp=Hp, Wp=Wp, Ho=Ho, Wo=Wo, k=pk, Hop=Hop, Wop=Wop))
        Cin, Hc, Wc = nf, Hop, Wop
    return geo


def _layer_cfg(geo):
    """Static per-layer constants used by the fused kernel."""
    L = len(geo)
    cfg = []
    for l, g in enumerate(geo):
        pc_next = geo[l + 1]["pc"] if l < L - 1 else 0
        k, pp = g["k"], g["pp"]
        # Post-ReLU values are >= 0 and every pool window contains >= 1 valid element
        # (guaranteed by pp < k with floor mode), so 0-filled pad positions never win the max.
        assert 0 <= pp < k
        Hp_next = g["Hop"] + 2 * pc_next          # next conv input rows per image (H-padded)
        Ho_used = min(g["Ho"], g["Hop"] * k - pp)  # conv rows any pool window can read
        assert Ho_used >= 1 and g["Hin"] + 2 * g["pc"] >= g["fs"]
        cfg.append(dict(KH=g["fs"], Kdim=g["Win"] * g["Cin"], k=k,
                        Hp=g["Hin"] + 2 * g["pc"], Ho_used=Ho_used,
                        Hp_next=Hp_next, roff=pc_next * k + pp,
                        Wblk=g["Wop"] * g["Cout"]))
    return cfg


# --------------------------- one-time weight prep -----------------------------

def prepare_params(params, classifier, action, num_input, H, W):
    """Expand torch-layout weights into the fused kernel's matrices (runs once).

    Conv weight (Cout, Cin, KH, KW) -> per-KH-row matrix M[i] of shape
    (Win*Cin, k*Wop*Cout).  Column (j, ow, co) holds the conv kernel column that produces the
    conv output at width position w_out = ow*k - pp + j (zero column if w_out is out of range),
    so the W-direction max-pool becomes a max over k contiguous lane blocks.  Both the conv's
    W zero-padding and the pool's left/right padding are folded into this matrix (dropped /
    zero columns), so activations never carry W pad lanes.
    """
    geo = _layer_geometry(action, num_input, H, W)
    prepped = []
    for g, p in zip(geo, params):
        w = np.asarray(p["w"], np.float32)            # (Cout, Cin, KH, KW)
        b = np.asarray(p["b"], np.float32)
        Cout, Cin, KH, KW = w.shape
        Win, Wo, Wop = g["Win"], g["Wo"], g["Wop"]
        k, pp, pc = g["k"], g["pp"], g["pc"]
        Wblk = Wop * Cout
        Kdim = Win * Cin
        M = np.zeros((KH, Kdim, k * Wblk), np.float32)
        bexp = np.zeros((1, k * Wblk), np.float32)
        for j in range(k):
            for ow in range(Wop):
                w_out = ow * k - pp + j
                if not (0 <= w_out < Wo):
                    continue                           # pool pad / past-edge -> zero column
                col0 = j * Wblk + ow * Cout
                bexp[0, col0:col0 + Cout] = b
                for jj in range(KW):
                    w_in = w_out + jj - pc
                    if not (0 <= w_in < Win):
                        continue                       # conv W-pad -> drop the row
                    for i in range(KH):
                        M[i, w_in * Cin:(w_in + 1) * Cin, col0:col0 + Cout] = w[:, :, i, jj].T
        prepped.append((jnp.asarray(M), jnp.asarray(bexp)))
    cw, cb = classifier
    cwT = jnp.asarray(np.asarray(cw, np.float32).T)            # (C_last, num_classes)
    cb2 = jnp.asarray(np.asarray(cb, np.float32).reshape(1, -1))
    return prepped, (cwT, cb2)


# ------------------------------- fused kernel ---------------------------------

def make_fused_forward(action, num_input, num_classes, H, W, block_batch=32):
    geo = _layer_geometry(action, num_input, H, W)
    cfg = _layer_cfg(geo)
    L = len(geo)
    assert geo[-1]["Hop"] == 1 and geo[-1]["Wop"] == 1, (
        "classifier expects a 1x1 final spatial map (as the PyTorch module does)")
    H0, WC0 = H, W * num_input
    pc1, Hp1 = geo[0]["pc"], cfg[0]["Hp"]

    def forward(x_nchw, prepped, classifier_prepped):
        N = x_nchw.shape[0]
        B = N if N <= block_batch else block_batch     # images per grid step
        n_blocks = -(-N // B)
        N_pad = n_blocks * B

        # Input prep (no HBM pad round-trip): NCHW -> NHWC row-flat; zero padding is
        # applied inside the kernel when packing images into the layer-0 slab.
        x = jnp.transpose(x_nchw, (0, 2, 3, 1)).astype(jnp.float32).reshape(N, H0, WC0)
        if N_pad != N:
            x = jnp.pad(x, ((0, N_pad - N), (0, 0), (0, 0)))

        def kernel(x_ref, *rest):
            wrefs = [rest[2 * l] for l in range(L)]
            brefs = [rest[2 * l + 1] for l in range(L)]
            cw_ref, cb_ref = rest[2 * L], rest[2 * L + 1]
            o_ref = rest[2 * L + 2]
            slab = rest[2 * L + 3]
            hbufs = rest[2 * L + 4: 2 * L + 4 + L]

            # ---- layer-0 input: pack B images into one tall, H-zero-padded slab ----
            # (Per-step init keeps the pad ring correct on every core under "parallel".)
            slab[...] = jnp.zeros(slab.shape, jnp.float32)
            for b in range(B):
                r0 = b * Hp1 + pc1
                slab[r0:r0 + H0, :] = x_ref[b]

            cur = None  # conv-input VALUE for layers >= 1 (produced by the previous H-pool)
            for l, c in enumerate(cfg):
                KH, k = c["KH"], c["k"]
                Hp, Ho_used = c["Hp"], c["Ho_used"]
                Hp_next, roff, Wblk = c["Hp_next"], c["roff"], c["Wblk"]
                Mrows = B * Hp - KH + 1

                # Conv (KH tall row-band matmuls vs pool-expanded Toeplitz weight) + bias + ReLU
                acc = None
                for i in range(KH):
                    band = slab[i:i + Mrows, :] if l == 0 else cur[i:i + Mrows, :]
                    part = jnp.dot(band, wrefs[l][i],
                                   preferred_element_type=jnp.float32)
                    acc = part if acc is None else acc + part
                y = jnp.maximum(acc + brefs[l][...], 0.0)   # (Mrows, k*Wblk)
                # TODO(synk): nn.Dropout is identity (inference mode).

                # W-direction max-pool: max over k contiguous, full-width lane blocks.
                yw = y[:, 0:Wblk]
                for j in range(1, k):
                    yw = jnp.maximum(yw, y[:, j * Wblk:(j + 1) * Wblk])  # (Mrows, Wblk)

                # Repack valid conv rows per image into the H-pool buffer (lane offset 0,
                # one wide store per image); everything else stays 0 = pool/conv padding.
                hb = hbufs[l]
                hb[...] = jnp.zeros(hb.shape, jnp.float32)
                for b in range(B):
                    d0 = b * Hp_next * k + roff
                    hb[d0:d0 + Ho_used, :] = yw[b * Hp:b * Hp + Ho_used, :]

                # H-direction max-pool: k strided full-width row slices + max.
                # The result IS the next layer's conv input (zero rows = its H padding),
                # or the (B, C_last) feature matrix after the last layer.
                Hn = B * Hp_next
                if Hn == 1:
                    parts = [hb[r:r + 1, :] for r in range(k)]
                else:
                    parts = [hb[pl.ds(r, Hn, stride=k), :] for r in range(k)]
                nxt = parts[0]
                for r in range(1, k):
                    nxt = jnp.maximum(nxt, parts[r])
                cur = nxt                                   # (B*Hp_next, Wblk)

            # ---- flatten (1x1 spatial -> channels) + batched Linear classifier ----
            o_ref[...] = (jnp.dot(cur, cw_ref[...], preferred_element_type=jnp.float32)
                          + cb_ref[...])

        in_specs = [pl.BlockSpec((B, H0, WC0), lambda n: (n, 0, 0))]
        inputs = [x]
        for (Wm, bias) in prepped:
            in_specs.append(pl.BlockSpec(Wm.shape, lambda n: (0, 0, 0)))
            in_specs.append(pl.BlockSpec(bias.shape, lambda n: (0, 0)))
            inputs += [Wm, bias]
        cwT, cb2 = classifier_prepped
        in_specs.append(pl.BlockSpec(cwT.shape, lambda n: (0, 0)))
        in_specs.append(pl.BlockSpec(cb2.shape, lambda n: (0, 0)))
        inputs += [cwT, cb2]

        scratch_shapes = [pltpu.VMEM((B * Hp1, WC0), jnp.float32)]      # layer-0 input slab
        for c in cfg:
            scratch_shapes.append(
                pltpu.VMEM((B * c["Hp_next"] * c["k"], c["Wblk"]), jnp.float32))

        out = pl.pallas_call(
            kernel,
            out_shape=jax.ShapeDtypeStruct((N_pad, num_classes), jnp.float32),
            grid=(n_blocks,),
            in_specs=in_specs,
            out_specs=pl.BlockSpec((B, num_classes), lambda n: (n, 0)),
            scratch_shapes=scratch_shapes,
            compiler_params=pltpu.CompilerParams(
                dimension_semantics=("parallel",)),
        )(*inputs)
        return out[:N]

    return forward


# ----------------------------- params (torch layout) --------------------------

def init_cnn_params(key, num_input, num_classes, action):
    """Deterministic init mimicking PyTorch's uniform(-1/sqrt(fan_in), 1/sqrt(fan_in))."""
    params = []
    in_ch = num_input
    for (fs, nf, _pk, _dr) in action:
        key, k1, k2 = jax.random.split(key, 3)
        bound = float(in_ch * fs * fs) ** -0.5
        w = jax.random.uniform(k1, (nf, in_ch, fs, fs), jnp.float32, -bound, bound)
        b = jax.random.uniform(k2, (nf,), jnp.float32, -bound, bound)
        params.append({"w": w, "b": b})
        in_ch = nf
    key, k1, k2 = jax.random.split(key, 3)
    bound = float(in_ch) ** -0.5
    cw = jax.random.uniform(k1, (num_classes, in_ch), jnp.float32, -bound, bound)
    cb = jax.random.uniform(k2, (num_classes,), jnp.float32, -bound, bound)
    return params, (cw, cb)


# -------------------------- pure-JAX reference (check) ------------------------

def cnn_forward_ref(x_nchw, params, classifier, action):
    x = jnp.transpose(x_nchw, (0, 2, 3, 1)).astype(jnp.float32)
    for p, (fs, _nf, pk, _dr) in zip(params, action):
        for_pd = fs + 1 if fs % 2 == 0 else fs
        pad = int(for_pd / 2 - 0.5)
        pool_pad = int((pk + 1) / 2 - 0.5)
        w_hwio = jnp.transpose(p["w"], (2, 3, 1, 0))
        x = lax.conv_general_dilated(
            x, w_hwio, window_strides=(1, 1),
            padding=[(pad, pad), (pad, pad)],
            dimension_numbers=("NHWC", "HWIO", "NHWC")) + p["b"]
        x = jnp.maximum(x, 0.0)
        x = lax.reduce_window(
            x, -jnp.inf, lax.max,
            window_dimensions=(1, pk, pk, 1), window_strides=(1, pk, pk, 1),
            padding=[(0, 0), (pool_pad, pool_pad), (pool_pad, pool_pad), (0, 0)])
    x = x.reshape(x.shape[0], -1)
    cw, cb = classifier
    return x @ cw.T + cb


# ------------------------------------ main -------------------------------------

if __name__ == "__main__":
    num_input, num_classes = 4, 10
    # action rows: (filter_size, num_filters, max_pool_ksize, dropout_rate_percent)
    action = [(3, 8, 4, 10), (5, 16, 4, 20), (3, 16, 4, 30)]

    key = jax.random.PRNGKey(0)
    kx, kp = jax.random.split(key)
    x = jax.random.normal(kx, (2, num_input, 16, 16), jnp.float32)   # NCHW, like PyTorch

    params, classifier = init_cnn_params(kp, num_input, num_classes, action)

    # One-time weight preprocessing + fused forward (single pallas_call).
    prepped, cls_prepped = prepare_params(params, classifier, action, num_input, 16, 16)
    forward = jax.jit(make_fused_forward(action, num_input, num_classes, 16, 16))

    logits = forward(x, prepped, cls_prepped)
    jax.block_until_ready(logits)

    ref = cnn_forward_ref(x, params, classifier, action)
    assert logits.shape == (2, num_classes), logits.shape
    assert jnp.allclose(logits, ref, rtol=1e-4, atol=1e-4), (
        float(jnp.max(jnp.abs(logits - ref))))

    print("KERNEL_OK")
</pallas_src>

<mosaic_0001>
module attributes {stable_mosaic.version = 11 : i64} {
  func.func @kernel(%arg0: i32, %arg1: memref<2x16x64xf32, #tpu.memory_space<vmem>>, %arg2: memref<3x64x160xf32, #tpu.memory_space<vmem>>, %arg3: memref<1x160xf32, #tpu.memory_space<vmem>>, %arg4: memref<5x40x128xf32, #tpu.memory_space<vmem>>, %arg5: memref<1x128xf32, #tpu.memory_space<vmem>>, %arg6: memref<3x32x64xf32, #tpu.memory_space<vmem>>, %arg7: memref<1x64xf32, #tpu.memory_space<vmem>>, %arg8: memref<16x10xf32, #tpu.memory_space<vmem>>, %arg9: memref<1x10xf32, #tpu.memory_space<vmem>>, %arg10: memref<2x10xf32, #tpu.memory_space<vmem>>, %arg11: memref<36x64xf32, #tpu.memory_space<vmem>>, %arg12: memref<72x40xf32, #tpu.memory_space<vmem>>, %arg13: memref<32x32xf32, #tpu.memory_space<vmem>>, %arg14: memref<8x16xf32, #tpu.memory_space<vmem>>) attributes {dimension_semantics = [#tpu.dimension_semantics<parallel>], iteration_bounds = array<i64: 1>, scalar_prefetch = 0 : i64, scratch_operands = 4 : i64, tpu.core_type = #tpu.core_type<tc>, window_params = [{transform_indices = @transform_0, window_bounds = array<i64: 2, 16, 64>}, {pipeline_mode = #tpu.pipeline_mode<synchronous>, transform_indices = @transform_1, window_bounds = array<i64: 3, 64, 160>}, {pipeline_mode = #tpu.pipeline_mode<synchronous>, transform_indices = @transform_2, window_bounds = array<i64: 1, 160>}, {pipeline_mode = #tpu.pipeline_mode<synchronous>, transform_indices = @transform_3, window_bounds = array<i64: 5, 40, 128>}, {pipeline_mode = #tpu.pipeline_mode<synchronous>, transform_indices = @transform_4, window_bounds = array<i64: 1, 128>}, {pipeline_mode = #tpu.pipeline_mode<synchronous>, transform_indices = @transform_5, window_bounds = array<i64: 3, 32, 64>}, {pipeline_mode = #tpu.pipeline_mode<synchronous>, transform_indices = @transform_6, window_bounds = array<i64: 1, 64>}, {pipeline_mode = #tpu.pipeline_mode<synchronous>, transform_indices = @transform_7, window_bounds = array<i64: 16, 10>}, {pipeline_mode = #tpu.pipeline_mode<synchronous>, transform_indices = @transform_8, window_bounds = array<i64: 1, 10>}, {transform_indices = @transform_9, window_bounds = array<i64: 2, 10>}]} {
    %cst = arith.constant 0.000000e+00 : f32
    %0 = vector.broadcast %cst : f32 to vector<36x64xf32>
    %c0 = arith.constant 0 : index
    %c0_0 = arith.constant 0 : index
    %1 = vector.load %arg11[%c0, %c0_0] : memref<36x64xf32, #tpu.memory_space<vmem>>, vector<36x64xf32>
    tpu.vector_store %arg11[%c0, %c0_0], %0 {strides = array<i32>} : memref<36x64xf32, #tpu.memory_space<vmem>>, vector<36x64xf32>,
    %c0_1 = arith.constant 0 : index
    %c0_2 = arith.constant 0 : index
    %c0_3 = arith.constant 0 : index
    %2 = vector.load %arg1[%c0_1, %c0_2, %c0_3] : memref<2x16x64xf32, #tpu.memory_space<vmem>>, vector<1x16x64xf32>
    %3 = vector.shape_cast %2 : vector<1x16x64xf32> to vector<16x64xf32>
    %c1 = arith.constant 1 : index
    %c0_4 = arith.constant 0 : index
    %4 = vector.load %arg11[%c1, %c0_4] : memref<36x64xf32, #tpu.memory_space<vmem>>, vector<16x64xf32>
    tpu.vector_store %arg11[%c1, %c0_4], %3 {strides = array<i32>} : memref<36x64xf32, #tpu.memory_space<vmem>>, vector<16x64xf32>,
    %c1_5 = arith.constant 1 : index
    %c0_6 = arith.constant 0 : index
    %c0_7 = arith.constant 0 : index
    %5 = vector.load %arg1[%c1_5, %c0_6, %c0_7] : memref<2x16x64xf32, #tpu.memory_space<vmem>>, vector<1x16x64xf32>
    %6 = vector.shape_cast %5 : vector<1x16x64xf32> to vector<16x64xf32>
    %c19 = arith.constant 19 : index
    %c0_8 = arith.constant 0 : index
    %7 = vector.load %arg11[%c19, %c0_8] : memref<36x64xf32, #tpu.memory_space<vmem>>, vector<16x64xf32>
    tpu.vector_store %arg11[%c19, %c0_8], %6 {strides = array<i32>} : memref<36x64xf32, #tpu.memory_space<vmem>>, vector<16x64xf32>,
    %c0_9 = arith.constant 0 : index
    %c0_10 = arith.constant 0 : index
    %8 = vector.load %arg11[%c0_9, %c0_10] : memref<36x64xf32, #tpu.memory_space<vmem>>, vector<34x64xf32>
    %c0_11 = arith.constant 0 : index
    %c0_12 = arith.constant 0 : index
    %c0_13 = arith.constant 0 : index
    %9 = vector.load %arg2[%c0_11, %c0_12, %c0_13] : memref<3x64x160xf32, #tpu.memory_space<vmem>>, vector<1x64x160xf32>
    %10 = vector.shape_cast %9 : vector<1x64x160xf32> to vector<64x160xf32>
    %cst_14 = arith.constant dense<0.000000e+00> : vector<34x160xf32>
    %11 = tpu.matmul %8, %10, %cst_14 {dimension_numbers = #tpu.dot_dimension_numbers<[1], [0], [0], [1], [0, 0, 1, 1], [], []>} : vector<34x64xf32>, vector<64x160xf32>, vector<34x160xf32> -> vector<34x160xf32>
    %c1_15 = arith.constant 1 : index
    %c0_16 = arith.constant 0 : index
    %12 = vector.load %arg11[%c1_15, %c0_16] : memref<36x64xf32, #tpu.memory_space<vmem>>, vector<34x64xf32>
    %c1_17 = arith.constant 1 : index
    %c0_18 = arith.constant 0 : index
    %c0_19 = arith.constant 0 : index
    %13 = vector.load %arg2[%c1_17, %c0_18, %c0_19] : memref<3x64x160xf32, #tpu.memory_space<vmem>>, vector<1x64x160xf32>
    %14 = vector.shape_cast %13 : vector<1x64x160xf32> to vector<64x160xf32>
    %cst_20 = arith.constant dense<0.000000e+00> : vector<34x160xf32>
    %15 = tpu.matmul %12, %14, %cst_20 {dimension_numbers = #tpu.dot_dimension_numbers<[1], [0], [0], [1], [0, 0, 1, 1], [], []>} : vector<34x64xf32>, vector<64x160xf32>, vector<34x160xf32> -> vector<34x160xf32>
    %16 = arith.addf %11, %15 : vector<34x160xf32>
    %c2 = arith.constant 2 : index
    %c0_21 = arith.constant 0 : index
    %17 = vector.load %arg11[%c2, %c0_21] : memref<36x64xf32, #tpu.memory_space<vmem>>, vector<34x64xf32>
    %c2_22 = arith.constant 2 : index
    %c0_23 = arith.constant 0 : index
    %c0_24 = arith.constant 0 : index
    %18 = vector.load %arg2[%c2_22, %c0_23, %c0_24] : memref<3x64x160xf32, #tpu.memory_space<vmem>>, vector<1x64x160xf32>
    %19 = vector.shape_cast %18 : vector<1x64x160xf32> to vector<64x160xf32>
    %cst_25 = arith.constant dense<0.000000e+00> : vector<34x160xf32>
    %20 = tpu.matmul %17, %19, %cst_25 {dimension_numbers = #tpu.dot_dimension_numbers<[1], [0], [0], [1], [0, 0, 1, 1], [], []>} : vector<34x64xf32>, vector<64x160xf32>, vector<34x160xf32> -> vector<34x160xf32>
    %21 = arith.addf %16, %20 : vector<34x160xf32>
    %c0_26 = arith.constant 0 : index
    %c0_27 = arith.constant 0 : index
    %22 = vector.load %arg3[%c0_26, %c0_27] : memref<1x160xf32, #tpu.memory_space<vmem>>, vector<1x160xf32>
    %23 = vector.broadcast %22 : vector<1x160xf32> to vector<34x160xf32>
    %24 = arith.addf %21, %23 : vector<34x160xf32>
    %cst_28 = arith.constant 0.000000e+00 : f32
    %25 = vector.broadcast %cst_28 : f32 to vector<34x160xf32>
    %26 = arith.maximumf %24, %25 : vector<34x160xf32>
    %27 = vector.extract_strided_slice %26 {offsets = [0, 0], sizes = [34, 40], strides = [1, 1]} : vector<34x160xf32> to vector<34x40xf32>
    %28 = vector.extract_strided_slice %26 {offsets = [0, 40], sizes = [34, 40], strides = [1, 1]} : vector<34x160xf32> to vector<34x40xf32>
    %29 = arith.maximumf %27, %28 : vector<34x40xf32>
    %30 = vector.extract_strided_slice %26 {offsets = [0, 80], sizes = [34, 40], strides = [1, 1]} : vector<34x160xf32> to vector<34x40xf32>
    %31 = arith.maximumf %29, %30 : vector<34x40xf32>
    %32 = vector.extract_strided_slice %26 {offsets = [0, 120], sizes = [34, 40], strides = [1, 1]} : vector<34x160xf32> to vector<34x40xf32>
    %33 = arith.maximumf %31, %32 : vector<34x40xf32>
    %cst_29 = arith.constant 0.000000e+00 : f32
    %34 = vector.broadcast %cst_29 : f32 to vector<72x40xf32>
    %c0_30 = arith.constant 0 : index
    %c0_31 = arith.constant 0 : index
    %35 = vector.load %arg12[%c0_30, %c0_31] : memref<72x40xf32, #tpu.memory_space<vmem>>, vector<72x40xf32>
    tpu.vector_store %arg12[%c0_30, %c0_31], %34 {strides = array<i32>} : memref<72x40xf32, #tpu.memory_space<vmem>>, vector<72x40xf32>,
    %36 = vector.extract_strided_slice %33 {offsets = [0, 0], sizes = [16, 40], strides = [1, 1]} : vector<34x40xf32> to vector<16x40xf32>
    %c10 = arith.constant 10 : index
    %c0_32 = arith.constant 0 : index
    %37 = vector.load %arg12[%c10, %c0_32] : memref<72x40xf32, #tpu.memory_space<vmem>>, vector<16x40xf32>
    tpu.vector_store %arg12[%c10, %c0_32], %36 {strides = array<i32>} : memref<72x40xf32, #tpu.memory_space<vmem>>, vector<16x40xf32>,
    %38 = vector.extract_strided_slice %33 {offsets = [18, 0], sizes = [16, 40], strides = [1, 1]} : vector<34x40xf32> to vector<16x40xf32>
    %c46 = arith.constant 46 : index
    %c0_33 = arith.constant 0 : index
    %39 = vector.load %arg12[%c46, %c0_33] : memref<72x40xf32, #tpu.memory_space<vmem>>, vector<16x40xf32>
    tpu.vector_store %arg12[%c46, %c0_33], %38 {strides = array<i32>} : memref<72x40xf32, #tpu.memory_space<vmem>>, vector<16x40xf32>,
    %c0_34 = arith.constant 0 : index
    %c0_35 = arith.constant 0 : index
    %40 = tpu.strided_load %arg12[%c0_34, %c0_35] {strides = array<i32: 4, 1>} : memref<72x40xf32, #tpu.memory_space<vmem>>, vector<18x40xf32>
    %c1_36 = arith.constant 1 : index
    %c0_37 = arith.constant 0 : index
    %41 = tpu.strided_load %arg12[%c1_36, %c0_37] {strides = array<i32: 4, 1>} : memref<72x40xf32, #tpu.memory_space<vmem>>, vector<18x40xf32>
    %c2_38 = arith.constant 2 : index
    %c0_39 = arith.constant 0 : index
    %42 = tpu.strided_load %arg12[%c2_38, %c0_39] {strides = array<i32: 4, 1>} : memref<72x40xf32, #tpu.memory_space<vmem>>, vector<18x40xf32>
    %c3 = arith.constant 3 : index
    %c0_40 = arith.constant 0 : index
    %43 = tpu.strided_load %arg12[%c3, %c0_40] {strides = array<i32: 4, 1>} : memref<72x40xf32, #tpu.memory_space<vmem>>, vector<18x40xf32>
    %44 = arith.maximumf %40, %41 : vector<18x40xf32>
    %45 = arith.maximumf %44, %42 : vector<18x40xf32>
    %46 = arith.maximumf %45, %43 : vector<18x40xf32>
    %47 = vector.extract_strided_slice %46 {offsets = [0, 0], sizes = [14, 40], strides = [1, 1]} : vector<18x40xf32> to vector<14x40xf32>
    %c0_41 = arith.constant 0 : index
    %c0_42 = arith.constant 0 : index
    %c0_43 = arith.constant 0 : index
    %48 = vector.load %arg4[%c0_41, %c0_42, %c0_43] : memref<5x40x128xf32, #tpu.memory_space<vmem>>, vector<1x40x128xf32>
    %49 = vector.shape_cast %48 : vector<1x40x128xf32> to vector<40x128xf32>
    %cst_44 = arith.constant dense<0.000000e+00> : vector<14x128xf32>
    %50 = tpu.matmul %47, %49, %cst_44 {dimension_numbers = #tpu.dot_dimension_numbers<[1], [0], [0], [1], [0, 0, 1, 1], [], []>} : vector<14x40xf32>, vector<40x128xf32>, vector<14x128xf32> -> vector<14x128xf32>
    %51 = vector.extract_strided_slice %46 {offsets = [1, 0], sizes = [14, 40], strides = [1, 1]} : vector<18x40xf32> to vector<14x40xf32>
    %c1_45 = arith.constant 1 : index
    %c0_46 = arith.constant 0 : index
    %c0_47 = arith.constant 0 : index
    %52 = vector.load %arg4[%c1_45, %c0_46, %c0_47] : memref<5x40x128xf32, #tpu.memory_space<vmem>>, vector<1x40x128xf32>
    %53 = vector.shape_cast %52 : vector<1x40x128xf32> to vector<40x128xf32>
    %cst_48 = arith.constant dense<0.000000e+00> : vector<14x128xf32>
    %54 = tpu.matmul %51, %53, %cst_48 {dimension_numbers = #tpu.dot_dimension_numbers<[1], [0], [0], [1], [0, 0, 1, 1], [], []>} : vector<14x40xf32>, vector<40x128xf32>, vector<14x128xf32> -> vector<14x128xf32>
    %55 = arith.addf %50, %54 : vector<14x128xf32>
    %56 = vector.extract_strided_slice %46 {offsets = [2, 0], sizes = [14, 40], strides = [1, 1]} : vector<18x40xf32> to vector<14x40xf32>
    %c2_49 = arith.constant 2 : index
    %c0_50 = arith.constant 0 : index
    %c0_51 = arith.constant 0 : index
    %57 = vector.load %arg4[%c2_49, %c0_50, %c0_51] : memref<5x40x128xf32, #tpu.memory_space<vmem>>, vector<1x40x128xf32>
    %58 = vector.shape_cast %57 : vector<1x40x128xf32> to vector<40x128xf32>
    %cst_52 = arith.constant dense<0.000000e+00> : vector<14x128xf32>
    %59 = tpu.matmul %56, %58, %cst_52 {dimension_numbers = #tpu.dot_dimension_numbers<[1], [0], [0], [1], [0, 0, 1, 1], [], []>} : vector<14x40xf32>, vector<40x128xf32>, vector<14x128xf32> -> vector<14x128xf32>
    %60 = arith.addf %55, %59 : vector<14x128xf32>
    %61 = vector.extract_strided_slice %46 {offsets = [3, 0], sizes = [14, 40], strides = [1, 1]} : vector<18x40xf32> to vector<14x40xf32>
    %c3_53 = arith.constant 3 : index
    %c0_54 = arith.constant 0 : index
    %c0_55 = arith.constant 0 : index
    %62 = vector.load %arg4[%c3_53, %c0_54, %c0_55] : memref<5x40x128xf32, #tpu.memory_space<vmem>>, vector<1x40x128xf32>
    %63 = vector.shape_cast %62 : vector<1x40x128xf32> to vector<40x128xf32>
    %cst_56 = arith.constant dense<0.000000e+00> : vector<14x128xf32>
    %64 = tpu.matmul %61, %63, %cst_56 {dimension_numbers = #tpu.dot_dimension_numbers<[1], [0], [0], [1], [0, 0, 1, 1], [], []>} : vector<14x40xf32>, vector<40x128xf32>, vector<14x128xf32> -> vector<14x128xf32>
    %65 = arith.addf %60, %64 : vector<14x128xf32>
    %66 = vector.extract_strided_slice %46 {offsets = [4, 0], sizes = [14, 40], strides = [1, 1]} : vector<18x40xf32> to vector<14x40xf32>
    %c4 = arith.constant 4 : index
    %c0_57 = arith.constant 0 : index
    %c0_58 = arith.constant 0 : index
    %67 = vector.load %arg4[%c4, %c0_57, %c0_58] : memref<5x40x128xf32, #tpu.memory_space<vmem>>, vector<1x40x128xf32>
    %68 = vector.shape_cast %67 : vector<1x40x128xf32> to vector<40x128xf32>
    %cst_59 = arith.constant dense<0.000000e+00> : vector<14x128xf32>
    %69 = tpu.matmul %66, %68, %cst_59 {dimension_numbers = #tpu.dot_dimension_numbers<[1], [0], [0], [1], [0, 0, 1, 1], [], []>} : vector<14x40xf32>, vector<40x128xf32>, vector<14x128xf32> -> vector<14x128xf32>
    %70 = arith.addf %65, %69 : vector<14x128xf32>
    %c0_60 = arith.constant 0 : index
    %c0_61 = arith.constant 0 : index
    %71 = vector.load %arg5[%c0_60, %c0_61] : memref<1x128xf32, #tpu.memory_space<vmem>>, vector<1x128xf32>
    %72 = vector.broadcast %71 : vector<1x128xf32> to vector<14x128xf32>
    %73 = arith.addf %70, %72 : vector<14x128xf32>
    %cst_62 = arith.constant 0.000000e+00 : f32
    %74 = vector.broadcast %cst_62 : f32 to vector<14x128xf32>
    %75 = arith.maximumf %73, %74 : vector<14x128xf32>
    %76 = vector.extract_strided_slice %75 {offsets = [0, 0], sizes = [14, 32], strides = [1, 1]} : vector<14x128xf32> to vector<14x32xf32>
    %77 = vector.extract_strided_slice %75 {offsets = [0, 32], sizes = [14, 32], strides = [1, 1]} : vector<14x128xf32> to vector<14x32xf32>
    %78 = arith.maximumf %76, %77 : vector<14x32xf32>
    %79 = vector.extract_strided_slice %75 {offsets = [0, 64], sizes = [14, 32], strides = [1, 1]} : vector<14x128xf32> to vector<14x32xf32>
    %80 = arith.maximumf %78, %79 : vector<14x32xf32>
    %81 = vector.extract_strided_slice %75 {offsets = [0, 96], sizes = [14, 32], strides = [1, 1]} : vector<14x128xf32> to vector<14x32xf32>
    %82 = arith.maximumf %80, %81 : vector<14x32xf32>
    %cst_63 = arith.constant 0.000000e+00 : f32
    %83 = vector.broadcast %cst_63 : f32 to vector<32x32xf32>
    %c0_64 = arith.constant 0 : index
    %c0_65 = arith.constant 0 : index
    %84 = vector.load %arg13[%c0_64, %c0_65] : memref<32x32xf32, #tpu.memory_space<vmem>>, vector<32x32xf32>
    tpu.vector_store %arg13[%c0_64, %c0_65], %83 {strides = array<i32>} : memref<32x32xf32, #tpu.memory_space<vmem>>, vector<32x32xf32>,
    %85 = vector.extract_strided_slice %82 {offsets = [0, 0], sizes = [5, 32], strides = [1, 1]} : vector<14x32xf32> to vector<5x32xf32>
    %c6 = arith.constant 6 : index
    %c0_66 = arith.constant 0 : index
    %86 = vector.load %arg13[%c6, %c0_66] : memref<32x32xf32, #tpu.memory_space<vmem>>, vector<5x32xf32>
    tpu.vector_store %arg13[%c6, %c0_66], %85 {strides = array<i32>} : memref<32x32xf32, #tpu.memory_space<vmem>>, vector<5x32xf32>,
    %87 = vector.extract_strided_slice %82 {offsets = [9, 0], sizes = [5, 32], strides = [1, 1]} : vector<14x32xf32> to vector<5x32xf32>
    %c22 = arith.constant 22 : index
    %c0_67 = arith.constant 0 : index
    %88 = vector.load %arg13[%c22, %c0_67] : memref<32x32xf32, #tpu.memory_space<vmem>>, vector<5x32xf32>
    tpu.vector_store %arg13[%c22, %c0_67], %87 {strides = array<i32>} : memref<32x32xf32, #tpu.memory_space<vmem>>, vector<5x32xf32>,
    %c0_68 = arith.constant 0 : index
    %c0_69 = arith.constant 0 : index
    %89 = tpu.strided_load %arg13[%c0_68, %c0_69] {strides = array<i32: 4, 1>} : memref<32x32xf32, #tpu.memory_space<vmem>>, vector<8x32xf32>
    %c1_70 = arith.constant 1 : index
    %c0_71 = arith.constant 0 : index
    %90 = tpu.strided_load %arg13[%c1_70, %c0_71] {strides = array<i32: 4, 1>} : memref<32x32xf32, #tpu.memory_space<vmem>>, vector<8x32xf32>
    %c2_72 = arith.constant 2 : index
    %c0_73 = arith.constant 0 : index
    %91 = tpu.strided_load %arg13[%c2_72, %c0_73] {strides = array<i32: 4, 1>} : memref<32x32xf32, #tpu.memory_space<vmem>>, vector<8x32xf32>
    %c3_74 = arith.constant 3 : index
    %c0_75 = arith.constant 0 : index
    %92 = tpu.strided_load %arg13[%c3_74, %c0_75] {strides = array<i32: 4, 1>} : memref<32x32xf32, #tpu.memory_space<vmem>>, vector<8x32xf32>
    %93 = arith.maximumf %89, %90 : vector<8x32xf32>
    %94 = arith.maximumf %93, %91 : vector<8x32xf32>
    %95 = arith.maximumf %94, %92 : vector<8x32xf32>
    %96 = vector.extract_strided_slice %95 {offsets = [0, 0], sizes = [6, 32], strides = [1, 1]} : vector<8x32xf32> to vector<6x32xf32>
    %c0_76 = arith.constant 0 : index
    %c0_77 = arith.constant 0 : index
    %c0_78 = arith.constant 0 : index
    %97 = vector.load %arg6[%c0_76, %c0_77, %c0_78] : memref<3x32x64xf32, #tpu.memory_space<vmem>>, vector<1x32x64xf32>
    %98 = vector.shape_cast %97 : vector<1x32x64xf32> to vector<32x64xf32>
    %cst_79 = arith.constant dense<0.000000e+00> : vector<6x64xf32>
    %99 = tpu.matmul %96, %98, %cst_79 {dimension_numbers = #tpu.dot_dimension_numbers<[1], [0], [0], [1], [0, 0, 1, 1], [], []>} : vector<6x32xf32>, vector<32x64xf32>, vector<6x64xf32> -> vector<6x64xf32>
    %100 = vector.extract_strided_slice %95 {offsets = [1, 0], sizes = [6, 32], strides = [1, 1]} : vector<8x32xf32> to vector<6x32xf32>
    %c1_80 = arith.constant 1 : index
    %c0_81 = arith.constant 0 : index
    %c0_82 = arith.constant 0 : index
    %101 = vector.load %arg6[%c1_80, %c0_81, %c0_82] : memref<3x32x64xf32, #tpu.memory_space<vmem>>, vector<1x32x64xf32>
    %102 = vector.shape_cast %101 : vector<1x32x64xf32> to vector<32x64xf32>
    %cst_83 = arith.constant dense<0.000000e+00> : vector<6x64xf32>
    %103 = tpu.matmul %100, %102, %cst_83 {dimension_numbers = #tpu.dot_dimension_numbers<[1], [0], [0], [1], [0, 0, 1, 1], [], []>} : vector<6x32xf32>, vector<32x64xf32>, vector<6x64xf32> -> vector<6x64xf32>
    %104 = arith.addf %99, %103 : vector<6x64xf32>
    %105 = vector.extract_strided_slice %95 {offsets = [2, 0], sizes = [6, 32], strides = [1, 1]} : vector<8x32xf32> to vector<6x32xf32>
    %c2_84 = arith.constant 2 : index
    %c0_85 = arith.constant 0 : index
    %c0_86 = arith.constant 0 : index
    %106 = vector.load %arg6[%c2_84, %c0_85, %c0_86] : memref<3x32x64xf32, #tpu.memory_space<vmem>>, vector<1x32x64xf32>
    %107 = vector.shape_cast %106 : vector<1x32x64xf32> to vector<32x64xf32>
    %cst_87 = arith.constant dense<0.000000e+00> : vector<6x64xf32>
    %108 = tpu.matmul %105, %107, %cst_87 {dimension_numbers = #tpu.dot_dimension_numbers<[1], [0], [0], [1], [0, 0, 1, 1], [], []>} : vector<6x32xf32>, vector<32x64xf32>, vector<6x64xf32> -> vector<6x64xf32>
    %109 = arith.addf %104, %108 : vector<6x64xf32>
    %c0_88 = arith.constant 0 : index
    %c0_89 = arith.constant 0 : index
    %110 = vector.load %arg7[%c0_88, %c0_89] : memref<1x64xf32, #tpu.memory_space<vmem>>, vector<1x64xf32>
    %111 = vector.broadcast %110 : vector<1x64xf32> to vector<6x64xf32>
    %112 = arith.addf %109, %111 : vector<6x64xf32>
    %cst_90 = arith.constant 0.000000e+00 : f32
    %113 = vector.broadcast %cst_90 : f32 to vector<6x64xf32>
    %114 = arith.maximumf %112, %113 : vector<6x64xf32>
    %115 = vector.extract_strided_slice %114 {offsets = [0, 0], sizes = [6, 16], strides = [1, 1]} : vector<6x64xf32> to vector<6x16xf32>
    %116 = vector.extract_strided_slice %114 {offsets = [0, 16], sizes = [6, 16], strides = [1, 1]} : vector<6x64xf32> to vector<6x16xf32>
    %117 = arith.maximumf %115, %116 : vector<6x16xf32>
    %118 = vector.extract_strided_slice %114 {offsets = [0, 32], sizes = [6, 16], strides = [1, 1]} : vector<6x64xf32> to vector<6x16xf32>
    %119 = arith.maximumf %117, %118 : vector<6x16xf32>
    %120 = vector.extract_strided_slice %114 {offsets = [0, 48], sizes = [6, 16], strides = [1, 1]} : vector<6x64xf32> to vector<6x16xf32>
    %121 = arith.maximumf %119, %120 : vector<6x16xf32>
    %cst_91 = arith.constant 0.000000e+00 : f32
    %122 = vector.broadcast %cst_91 : f32 to vector<8x16xf32>
    %c0_92 = arith.constant 0 : index
    %c0_93 = arith.constant 0 : index
    %123 = vector.load %arg14[%c0_92, %c0_93] : memref<8x16xf32, #tpu.memory_space<vmem>>, vector<8x16xf32>
    tpu.vector_store %arg14[%c0_92, %c0_93], %122 {strides = array<i32>} : memref<8x16xf32, #tpu.memory_space<vmem>>, vector<8x16xf32>,
    %124 = vector.extract_strided_slice %121 {offsets = [0, 0], sizes = [2, 16], strides = [1, 1]} : vector<6x16xf32> to vector<2x16xf32>
    %c2_94 = arith.constant 2 : index
    %c0_95 = arith.constant 0 : index
    %125 = vector.load %arg14[%c2_94, %c0_95] : memref<8x16xf32, #tpu.memory_space<vmem>>, vector<2x16xf32>
    tpu.vector_store %arg14[%c2_94, %c0_95], %124 {strides = array<i32>} : memref<8x16xf32, #tpu.memory_space<vmem>>, vector<2x16xf32>,
    %126 = vector.extract_strided_slice %121 {offsets = [4, 0], sizes = [2, 16], strides = [1, 1]} : vector<6x16xf32> to vector<2x16xf32>
    %c6_96 = arith.constant 6 : index
    %c0_97 = arith.constant 0 : index
    %127 = vector.load %arg14[%c6_96, %c0_97] : memref<8x16xf32, #tpu.memory_space<vmem>>, vector<2x16xf32>
    tpu.vector_store %arg14[%c6_96, %c0_97], %126 {strides = array<i32>} : memref<8x16xf32, #tpu.memory_space<vmem>>, vector<2x16xf32>,
    %c0_98 = arith.constant 0 : index
    %c0_99 = arith.constant 0 : index
    %128 = tpu.strided_load %arg14[%c0_98, %c0_99] {strides = array<i32: 4, 1>} : memref<8x16xf32, #tpu.memory_space<vmem>>, vector<2x16xf32>
    %c1_100 = arith.constant 1 : index
    %c0_101 = arith.constant 0 : index
    %129 = tpu.strided_load %arg14[%c1_100, %c0_101] {strides = array<i32: 4, 1>} : memref<8x16xf32, #tpu.memory_space<vmem>>, vector<2x16xf32>
    %c2_102 = arith.constant 2 : index
    %c0_103 = arith.constant 0 : index
    %130 = tpu.strided_load %arg14[%c2_102, %c0_103] {strides = array<i32: 4, 1>} : memref<8x16xf32, #tpu.memory_space<vmem>>, vector<2x16xf32>
    %c3_104 = arith.constant 3 : index
    %c0_105 = arith.constant 0 : index
    %131 = tpu.strided_load %arg14[%c3_104, %c0_105] {strides = array<i32: 4, 1>} : memref<8x16xf32, #tpu.memory_space<vmem>>, vector<2x16xf32>
    %132 = arith.maximumf %128, %129 : vector<2x16xf32>
    %133 = arith.maximumf %132, %130 : vector<2x16xf32>
    %134 = arith.maximumf %133, %131 : vector<2x16xf32>
    %c0_106 = arith.constant 0 : index
    %c0_107 = arith.constant 0 : index
    %135 = vector.load %arg8[%c0_106, %c0_107] : memref<16x10xf32, #tpu.memory_space<vmem>>, vector<16x10xf32>
    %cst_108 = arith.constant dense<0.000000e+00> : vector<2x10xf32>
    %136 = tpu.matmul %134, %135, %cst_108 {dimension_numbers = #tpu.dot_dimension_numbers<[1], [0], [0], [1], [0, 0, 1, 1], [], []>} : vector<2x16xf32>, vector<16x10xf32>, vector<2x10xf32> -> vector<2x10xf32>
    %c0_109 = arith.constant 0 : index
    %c0_110 = arith.constant 0 : index
    %137 = vector.load %arg9[%c0_109, %c0_110] : memref<1x10xf32, #tpu.memory_space<vmem>>, vector<1x10xf32>
    %138 = vector.broadcast %137 : vector<1x10xf32> to vector<2x10xf32>
    %139 = arith.addf %136, %138 : vector<2x10xf32>
    %c0_111 = arith.constant 0 : index
    %c0_112 = arith.constant 0 : index
    %140 = vector.load %arg10[%c0_111, %c0_112] : memref<2x10xf32, #tpu.memory_space<vmem>>, vector<2x10xf32>
    tpu.vector_store %arg10[%c0_111, %c0_112], %139 {strides = array<i32>} : memref<2x10xf32, #tpu.memory_space<vmem>>, vector<2x10xf32>,
    return
  }
  func.func @transform_0(%arg0: i32) -> (i32, i32, i32) {
    %c0_i32 = arith.constant 0 : i32
    %c0_i32_0 = arith.constant 0 : i32
    %c0_i32_1 = arith.constant 0 : i32
    return %arg0, %c0_i32, %c0_i32_0 : i32, i32, i32
  }
  func.func @transform_1(%arg0: i32) -> (i32, i32, i32) {
    %c0_i32 = arith.constant 0 : i32
    %c0_i32_0 = arith.constant 0 : i32
    %c0_i32_1 = arith.constant 0 : i32
    %c0_i32_2 = arith.constant 0 : i32
    return %c0_i32, %c0_i32_0, %c0_i32_1 : i32, i32, i32
  }
  func.func @transform_2(%arg0: i32) -> (i32, i32) {
    %c0_i32 = arith.constant 0 : i32
    %c0_i32_0 = arith.constant 0 : i32
    %c0_i32_1 = arith.constant 0 : i32
    return %c0_i32, %c0_i32_0 : i32, i32
  }
  func.func @transform_3(%arg0: i32) -> (i32, i32, i32) {
    %c0_i32 = arith.constant 0 : i32
    %c0_i32_0 = arith.constant 0 : i32
    %c0_i32_1 = arith.constant 0 : i32
    %c0_i32_2 = arith.constant 0 : i32
    return %c0_i32, %c0_i32_0, %c0_i32_1 : i32, i32, i32
  }
  func.func @transform_4(%arg0: i32) -> (i32, i32) {
    %c0_i32 = arith.constant 0 : i32
    %c0_i32_0 = arith.constant 0 : i32
    %c0_i32_1 = arith.constant 0 : i32
    return %c0_i32, %c0_i32_0 : i32, i32
  }
  func.func @transform_5(%arg0: i32) -> (i32, i32, i32) {
    %c0_i32 = arith.constant 0 : i32
    %c0_i32_0 = arith.constant 0 : i32
    %c0_i32_1 = arith.constant 0 : i32
    %c0_i32_2 = arith.constant 0 : i32
    return %c0_i32, %c0_i32_0, %c0_i32_1 : i32, i32, i32
  }
  func.func @transform_6(%arg0: i32) -> (i32, i32) {
    %c0_i32 = arith.constant 0 : i32
    %c0_i32_0 = arith.constant 0 : i32
    %c0_i32_1 = arith.constant 0 : i32
    return %c0_i32, %c0_i32_0 : i32, i32
  }
  func.func @transform_7(%arg0: i32) -> (i32, i32) {
    %c0_i32 = arith.constant 0 : i32
    %c0_i32_0 = arith.constant 0 : i32
    %c0_i32_1 = arith.constant 0 : i32
    return %c0_i32, %c0_i32_0 : i32, i32
  }
  func.func @transform_8(%arg0: i32) -> (i32, i32) {
    %c0_i32 = arith.constant 0 : i32
    %c0_i32_0 = arith.constant 0 : i32
    %c0_i32_1 = arith.constant 0 : i32
    return %c0_i32, %c0_i32_0 : i32, i32
  }
  func.func @transform_9(%arg0: i32) -> (i32, i32) {
    %c0_i32 = arith.constant 0 : i32
    %c0_i32_0 = arith.constant 0 : i32
    return %arg0, %c0_i32 : i32, i32
  }
}

</mosaic_0001>

<llo_original>
// kernel: forward.1
$region0: #{forward.1}
  #allocation0 [shape = 'u32[]', space=smem, size = 0x4, offset = 0x4, fixed_abs, tag = 'smem constant byte address 0x4 - core index']
  #allocation1 [shape = 'u32[144,128]{1,0:T(1,128)}', space=vmem, size = 0x12000, scoped, tag = 'internal scratch']
  #allocation2 [shape = 'f32[36,64]{1,0:T(8,128)}', space=vmem, size = 0x5000, scoped, tag = 'scratch operand']
  #allocation3 [shape = 'f32[72,40]{1,0:T(8,128)}', space=vmem, size = 0x9000, scoped, tag = 'scratch operand']
  #allocation4 [shape = 'f32[32,32]{1,0:T(8,128)}', space=vmem, size = 0x4000, scoped, tag = 'scratch operand']
  #allocation5 [shape = 'f32[8,16]{1,0:T(8,128)}', space=vmem, size = 0x1000, scoped, tag = 'scratch operand']
  %s0 = inlined_call_operand.vmem [shape: f32[2,16,64], index: 0, kind: input, shape index: {}]
  %s1 = inlined_call_operand.vmem [shape: f32[3,64,160], index: 1, kind: input, shape index: {}]
  %s2 = inlined_call_operand.vmem [shape: f32[1,160], index: 2, kind: input, shape index: {}]
  %s3 = inlined_call_operand.hbm [shape: f32[5,40,128], index: 3, kind: input, shape index: {}]
  %s4 = inlined_call_operand.vmem [shape: f32[1,128], index: 4, kind: input, shape index: {}]
  %s5 = inlined_call_operand.hbm [shape: f32[3,32,64], index: 5, kind: input, shape index: {}]
  %s6 = inlined_call_operand.vmem [shape: f32[1,64], index: 6, kind: input, shape index: {}]
  %s7 = inlined_call_operand.vmem [shape: f32[16,10], index: 7, kind: input, shape index: {}]
  %s8 = inlined_call_operand.vmem [shape: f32[1,10], index: 8, kind: input, shape index: {}]
  %s9 = inlined_call_operand.hbm [shape: f32[2,10], index: 9, kind: output, shape index: {}]
  %s10 = sld [smem:[#allocation0]]
  $region54: #{forward.1} parent=0
    _
  %s12 = ssub.s32 1, %s10
  %s13 = scalar_select 0, %s12, %s10
  $region1: #{forward.1} parent=0
    #allocation6 [shape = 'u8[102400]{0}', space=vmem, size = 0x19000, scoped, tag = 'input window, operand 3, single buffered']
    #allocation7 [shape = 's32[1]{0}', space=sflag, size = 0x4, scoped, tag = 'scoped memory for forward.1']
    #allocation8 [shape = 's32[1]{0}', space=sflag, size = 0x4, scoped, tag = 'scoped memory for forward.1']
    #allocation9 [shape = 'u8[49152]{0}', space=vmem, size = 0xc000, scoped, tag = 'input window, operand 5, single buffered']
    #allocation10 [shape = 's32[1]{0}', space=sflag, size = 0x4, scoped, tag = 'scoped memory for forward.1']
    #allocation11 [shape = 'u8[1024]{0}', space=vmem, size = 0x400, scoped, tag = 'output window, operand 0, single buffered']
    %14 = vsyncpa [#allocation7], 0
    %15 = vsyncpa [#allocation10], 0
    %16 = vsyncpa [#allocation8], 0
    // Predicated region
    $region2: #{forward.1} parent=1 // pred_check
      _
    $region3: #{forward.1} parent=1 // pred_check_branch
      %18 = sbr.rel (0) target = $region5
    $region4: #{forward.1} parent=1 // pred_region
      _
    $region5: #{forward.1} parent=1 // pred_fallthru
      _
    // Predicated region
    $region6: #{forward.1} parent=1 // pred_check
      _
    $region7: #{forward.1} parent=1 // pred_check_branch
      %20 = sbr.rel (0) target = $region9
    $region8: #{forward.1} parent=1 // pred_region
      _
    $region9: #{forward.1} parent=1 // pred_fallthru
      _
    // Predicated region
    $region10: #{forward.1} parent=1 // pred_check
      _
    $region11: #{forward.1} parent=1 // pred_check_branch
      %22 = sbr.rel (0) target = $region13
    $region12: #{forward.1} parent=1 // pred_region
      _
    $region13: #{forward.1} parent=1 // pred_fallthru
      _
    // Predicated region
    $region14: #{forward.1} parent=1 // pred_check
      _
    $region15: #{forward.1} parent=1 // pred_check_branch
      %24 = sbr.rel (0) target = $region17
    $region16: #{forward.1} parent=1 // pred_region
      %s26 = ssub.s32 3200, 3200
      %27 = vsyncadd [#allocation7], %s26
      %s28 = sshll.u32 [#allocation6], 4
      %s29 = int_to_ptr.vmem [resolvable:$true] %s28
      %34 = dma.hbm_to_vmem [thread:$0]  %s3, 3200, %s29, [#allocation7], 128, 128, 8
    $region17: #{forward.1} parent=1 // pred_fallthru
      _
    // Predicated region
    $region18: #{forward.1} parent=1 // pred_check
      _
    $region19: #{forward.1} parent=1 // pred_check_branch
      %36 = sbr.rel (0) target = $region21
    $region20: #{forward.1} parent=1 // pred_region
      _
    $region21: #{forward.1} parent=1 // pred_fallthru
      _
    // Predicated region
    $region22: #{forward.1} parent=1 // pred_check
      _
    $region23: #{forward.1} parent=1 // pred_check_branch
      %38 = sbr.rel (0) target = $region25
    $region24: #{forward.1} parent=1 // pred_region
      %s40 = ssub.s32 1536, 1536
      %41 = vsyncadd [#allocation10], %s40
      %s42 = sshll.u32 [#allocation9], 4
      %s43 = int_to_ptr.vmem [resolvable:$true] %s42
      %48 = dma.hbm_to_vmem [thread:$0]  %s5, 1536, %s43, [#allocation10], 128, 128, 8
    $region25: #{forward.1} parent=1 // pred_fallthru
      _
    // Predicated region
    $region26: #{forward.1} parent=1 // pred_check
      _
    $region27: #{forward.1} parent=1 // pred_check_branch
      %50 = sbr.rel (0) target = $region29
    $region28: #{forward.1} parent=1 // pred_region
      _
    $region29: #{forward.1} parent=1 // pred_fallthru
      _
    // Predicated region
    $region30: #{forward.1} parent=1 // pred_check
      _
    $region31: #{forward.1} parent=1 // pred_check_branch
      %52 = sbr.rel (0) target = $region33
    $region32: #{forward.1} parent=1 // pred_region
      _
    $region33: #{forward.1} parent=1 // pred_fallthru
      _
    // Predicated region
    $region34: #{forward.1} parent=1 // pred_check
      _
    $region35: #{forward.1} parent=1 // pred_check_branch
      %54 = sbr.rel (0) target = $region37
    $region36: #{forward.1} parent=1 // pred_region
      _
    $region37: #{forward.1} parent=1 // pred_fallthru
      _
    // Predicated region
    $region38: #{forward.1} parent=1 // pred_check
      _
    $region39: #{forward.1} parent=1 // pred_check_branch
      %56 = sbr.rel (0) target = $region41
    $region40: #{forward.1} parent=1 // pred_region
      %57 = dma.done [#allocation7], 3200
    $region41: #{forward.1} parent=1 // pred_fallthru
      _
    // Predicated region
    $region42: #{forward.1} parent=1 // pred_check
      _
    $region43: #{forward.1} parent=1 // pred_check_branch
      %59 = sbr.rel (0) target = $region45
    $region44: #{forward.1} parent=1 // pred_region
      %60 = dma.done [#allocation10], 1536
    $region45: #{forward.1} parent=1 // pred_fallthru
      _
    %vm61 = vcmask 523264
    %62 = vst.msk [vmem:[#allocation2] sm:$0xff] %vm61, 0.0
    %63 = vst.msk [vmem:[#allocation2 + $0x8] sm:$0xff] %vm61, 0.0
    %64 = vst.msk [vmem:[#allocation2 + $0x10] sm:$0xff] %vm61, 0.0
    %65 = vst.msk [vmem:[#allocation2 + $0x18] sm:$0xff] %vm61, 0.0
    %vm66 = vcmask 519168
    %67 = vst.msk [vmem:[#allocation2 + $0x20] sm:$0xf] %vm66, 0.0
    %v68 = vld [vmem:[%s0] sm:$0xff]
    %v69 = vld [vmem:[%s0 + $0x8] sm:$0xff]
    %70 = vst.msk [vmem:[#allocation2 + $0x1] sm:$0xff] %vm61, %v68
    %71 = vst.msk [vmem:[#allocation2 + $0x9] sm:$0xff] %vm61, %v69
    %s72 = scalar_lea.vmem %s0, 16
    %v73 = vld [vmem:[%s72] sm:$0xff]
    %v74 = vld [vmem:[%s72 + $0x8] sm:$0xff]
    %75 = vst.msk [vmem:[#allocation2 + $0x13] sm:$0xff] %vm61, %v73
    %76 = vst.msk [vmem:[#allocation2 + $0x1b] sm:$0xff] %vm61, %v74
    %v77 = vld [vmem:[#allocation2] sm:$0xff]
    %v78 = vld [vmem:[#allocation2 + $0x8] sm:$0xff]
    %v79 = vld [vmem:[#allocation2 + $0x10] sm:$0xff]
    %v80 = vld [vmem:[#allocation2 + $0x18] sm:$0xff]
    %v81 = vld [vmem:[#allocation2 + $0x20] sm:$0x3]
    %v82 = vld [vmem:[%s1] sm:$0xff]
    %v83 = vld [vmem:[%s1 + $0x8] sm:$0xff]
    %v84 = vld [vmem:[%s1 + $0x10] sm:$0xff]
    %v85 = vld [vmem:[%s1 + $0x18] sm:$0xff]
    %v86 = vld [vmem:[%s1 + $0x20] sm:$0xff]
    %v87 = vld [vmem:[%s1 + $0x28] sm:$0xff]
    %v88 = vld [vmem:[%s1 + $0x30] sm:$0xff]
    %v89 = vld [vmem:[%s1 + $0x38] sm:$0xff]
    %v90 = vld [vmem:[%s1 + $0x40] sm:$0xff]
    %v91 = vld [vmem:[%s1 + $0x48] sm:$0xff]
    %v92 = vld [vmem:[%s1 + $0x50] sm:$0xff]
    %v93 = vld [vmem:[%s1 + $0x58] sm:$0xff]
    %v94 = vld [vmem:[%s1 + $0x60] sm:$0xff]
    %v95 = vld [vmem:[%s1 + $0x68] sm:$0xff]
    %v96 = vld [vmem:[%s1 + $0x70] sm:$0xff]
    %v97 = vld [vmem:[%s1 + $0x78] sm:$0xff]
    %v98 = vld [vmem:[#allocation2 + $0x1] sm:$0xff]
    %v99 = vld [vmem:[#allocation2 + $0x9] sm:$0xff]
    %v100 = vld [vmem:[#allocation2 + $0x11] sm:$0xff]
    %v101 = vld [vmem:[#allocation2 + $0x19] sm:$0xff]
    %v102 = vld [vmem:[#allocation2 + $0x21] sm:$0x3]
    %s103 = scalar_lea.vmem %s1, 128
    %v104 = vld [vmem:[%s103] sm:$0xff]
    %v105 = vld [vmem:[%s103 + $0x8] sm:$0xff]
    %v106 = vld [vmem:[%s103 + $0x10] sm:$0xff]
    %v107 = vld [vmem:[%s103 + $0x18] sm:$0xff]
    %v108 = vld [vmem:[%s103 + $0x20] sm:$0xff]
    %v109 = vld [vmem:[%s103 + $0x28] sm:$0xff]
    %v110 = vld [vmem:[%s103 + $0x30] sm:$0xff]
    %v111 = vld [vmem:[%s103 + $0x38] sm:$0xff]
    %v112 = vld [vmem:[%s103 + $0x40] sm:$0xff]
    %v113 = vld [vmem:[%s103 + $0x48] sm:$0xff]
    %v114 = vld [vmem:[%s103 + $0x50] sm:$0xff]
    %v115 = vld [vmem:[%s103 + $0x58] sm:$0xff]
    %v116 = vld [vmem:[%s103 + $0x60] sm:$0xff]
    %v117 = vld [vmem:[%s103 + $0x68] sm:$0xff]
    %v118 = vld [vmem:[%s103 + $0x70] sm:$0xff]
    %v119 = vld [vmem:[%s103 + $0x78] sm:$0xff]
    %v121 = vsel %vm61, %v98, 0
    %v124 = vsel %vm61, %v99, 0
    %v127 = vsel %vm61, %v100, 0
    %v130 = vsel %vm61, %v101, 0
    %v133 = vsel %vm61, %v102, 0
    %135 = vmatprep.subr.mxu0 %v105
    %136 = vmatpush1.msra.mxu0 %v104
    %137 = vmatprep.subr.mxu0 %v107
    %138 = vmatpush1.msra.mxu0 %v106
    %139 = vmatprep.subr.mxu0 %v109
    %140 = vmatpush1.msra.mxu0 %v108
    %141 = vmatprep.subr.mxu0 %v111
    %142 = vmatpush1.msra.mxu0 %v110
    %143 = vmatprep.subr.mxu0 %v113
    %144 = vmatpush1.msra.mxu0 %v112
    %145 = vmatprep.subr.mxu0 %v115
    %146 = vmatpush1.msra.mxu0 %v114
    %147 = vmatprep.subr.mxu0 %v117
    %148 = vmatpush1.msra.mxu0 %v116
    %149 = vmatprep.subr.mxu0 %v119
    %150 = vmatpush1.msra.mxu0 %v118
    %151 = vmatprep.subr.mxu0 0.0
    %152 = vmatpush1.msra.mxu0 0.0
    %153 = vmatprep.subr.mxu0 0.0
    %154 = vmatpush1.msra.mxu0 0.0
    %155 = vmatprep.subr.mxu0 0.0
    %156 = vmatpush1.msra.mxu0 0.0
    %157 = vmatprep.subr.mxu0 0.0
    %158 = vmatpush1.msra.mxu0 0.0
    %159 = vmatprep.subr.mxu0 0.0
    %160 = vmatpush1.msra.mxu0 0.0
    %161 = vmatprep.subr.mxu0 0.0
    %162 = vmatpush1.msra.mxu0 0.0
    %163 = vmatprep.subr.mxu0 0.0
    %164 = vmatpush1.msra.mxu0 0.0
    %165 = vmatprep.subr.mxu0 0.0
    %166 = vmatpush1.msra.mxu0 0.0
    %167 = vmatprep.subr.mxu0 0.0
    %168 = vmatpush1.msra.mxu0 0.0
    %169 = vmatprep.subr.mxu0 0.0
    %170 = vmatpush1.msra.mxu0 0.0
    %171 = vmatprep.subr.mxu0 0.0
    %172 = vmatpush1.msra.mxu0 0.0
    %173 = vmatprep.subr.mxu0 0.0
    %174 = vmatpush1.msra.mxu0 0.0
    %175 = vmatprep.subr.mxu0 0.0
    %176 = vmatpush1.msra.mxu0 0.0
    %177 = vmatprep.subr.mxu0 0.0
    %178 = vmatpush1.msra.mxu0 0.0
    %179 = vmatprep.subr.mxu0 0.0
    %180 = vmatpush1.msra.mxu0 0.0
    %181 = vmatprep.subr.mxu0 0.0
    %182 = vmatpush1.msra.mxu0 0.0
    %183 = vmatprep.subr.mxu0 0.0
    %184 = vmatpush1.msra.mxu0 0.0
    %185 = vmatprep.subr.mxu0 0.0
    %186 = vmatpush1.msra.mxu0 0.0
    %187 = vmatprep.subr.mxu0 0.0
    %188 = vmatpush1.msra.mxu0 0.0
    %189 = vmatprep.subr.mxu0 0.0
    %190 = vmatpush1.msra.mxu0 0.0
    %191 = vmatprep.subr.mxu0 0.0
    %192 = vmatpush1.msra.mxu0 0.0
    %193 = vmatprep.subr.mxu0 0.0
    %194 = vmatpush1.msra.mxu0 0.0
    %195 = vmatprep.subr.mxu0 0.0
    %196 = vmatpush1.msra.mxu0 0.0
    %197 = vmatprep.subr.mxu0 0.0
    %198 = vmatpush1.msra.mxu0 0.0
    %199 = vmatprep.mubr.f32.mxu0 0.0
    %200 = vmatmul.mubr.f32.gmra.mrb[0].mxu0 %v121
    %v201 = vpop.f32.mrb[0].mxu0
    %v202 = vadd.f32 0.0, %v201
    %v203 = vpop.f32.mrb[0].mxu0
    %v204 = vadd.f32 0.0, %v203
    %205 = vmatprep.mubr.f32.mxu0 0.0
    %206 = vmatmul.mubr.f32.gmra.mrb[0].mxu0 %v124
    %v207 = vpop.f32.mrb[0].mxu0
    %v208 = vadd.f32 0.0, %v207
    %v209 = vpop.f32.mrb[0].mxu0
    %v210 = vadd.f32 0.0, %v209
    %211 = vmatprep.mubr.f32.mxu0 0.0
    %212 = vmatmul.mubr.f32.gmra.mrb[0].mxu0 %v127
    %v213 = vpop.f32.mrb[0].mxu0
    %v214 = vadd.f32 0.0, %v213
    %v215 = vpop.f32.mrb[0].mxu0
    %v216 = vadd.f32 0.0, %v215
    %217 = vmatprep.mubr.f32.mxu0 0.0
    %218 = vmatmul.mubr.f32.gmra.mrb[0].mxu0 %v130
    %v219 = vpop.f32.mrb[0].mxu0
    %v220 = vadd.f32 0.0, %v219
    %v221 = vpop.f32.mrb[0].mxu0
    %v222 = vadd.f32 0.0, %v221
    %223 = vmatprep.mubr.f32.mxu0 0.0
    %224 = vmatmul.mubr.f32.gmra.mrb[0].mxu0 %v133
    %v225 = vpop.f32.mrb[0].mxu0
    %v226 = vadd.f32 0.0, %v225
    %v227 = vpop.f32.mrb[0].mxu0
    %v228 = vadd.f32 0.0, %v227
    %229 = vdwg.mxu0
    %v231 = vsel %vm61, %v77, 0
    %v234 = vsel %vm61, %v78, 0
    %v237 = vsel %vm61, %v79, 0
    %v240 = vsel %vm61, %v80, 0
    %v243 = vsel %vm61, %v81, 0
    %245 = vmatprep.subr.mxu0 %v83
    %246 = vmatpush1.msra.mxu0 %v82
    %247 = vmatprep.subr.mxu0 %v85
    %248 = vmatpush1.msra.mxu0 %v84
    %249 = vmatprep.subr.mxu0 %v87
    %250 = vmatpush1.msra.mxu0 %v86
    %251 = vmatprep.subr.mxu0 %v89
    %252 = vmatpush1.msra.mxu0 %v88
    %253 = vmatprep.subr.mxu0 %v91
    %254 = vmatpush1.msra.mxu0 %v90
    %255 = vmatprep.subr.mxu0 %v93
    %256 = vmatpush1.msra.mxu0 %v92
    %257 = vmatprep.subr.mxu0 %v95
    %258 = vmatpush1.msra.mxu0 %v94
    %259 = vmatprep.subr.mxu0 %v97
    %260 = vmatpush1.msra.mxu0 %v96
    %261 = vmatprep.subr.mxu0 0.0
    %262 = vmatpush1.msra.mxu0 0.0
    %263 = vmatprep.subr.mxu0 0.0
    %264 = vmatpush1.msra.mxu0 0.0
    %265 = vmatprep.subr.mxu0 0.0
    %266 = vmatpush1.msra.mxu0 0.0
    %267 = vmatprep.subr.mxu0 0.0
    %268 = vmatpush1.msra.mxu0 0.0
    %269 = vmatprep.subr.mxu0 0.0
    %270 = vmatpush1.msra.mxu0 0.0
    %271 = vmatprep.subr.mxu0 0.0
    %272 = vmatpush1.msra.mxu0 0.0
    %273 = vmatprep.subr.mxu0 0.0
    %274 = vmatpush1.msra.mxu0 0.0
    %275 = vmatprep.subr.mxu0 0.0
    %276 = vmatpush1.msra.mxu0 0.0
    %277 = vmatprep.subr.mxu0 0.0
    %278 = vmatpush1.msra.mxu0 0.0
    %279 = vmatprep.subr.mxu0 0.0
    %280 = vmatpush1.msra.mxu0 0.0
    %281 = vmatprep.subr.mxu0 0.0
    %282 = vmatpush1.msra.mxu0 0.0
    %283 = vmatprep.subr.mxu0 0.0
    %284 = vmatpush1.msra.mxu0 0.0
    %285 = vmatprep.subr.mxu0 0.0
    %286 = vmatpush1.msra.mxu0 0.0
    %287 = vmatprep.subr.mxu0 0.0
    %288 = vmatpush1.msra.mxu0 0.0
    %289 = vmatprep.subr.mxu0 0.0
    %290 = vmatpush1.msra.mxu0 0.0
    %291 = vmatprep.subr.mxu0 0.0
    %292 = vmatpush1.msra.mxu0 0.0
    %293 = vmatprep.subr.mxu0 0.0
    %294 = vmatpush1.msra.mxu0 0.0
    %295 = vmatprep.subr.mxu0 0.0
    %296 = vmatpush1.msra.mxu0 0.0
    %297 = vmatprep.subr.mxu0 0.0
    %298 = vmatpush1.msra.mxu0 0.0
    %299 = vmatprep.subr.mxu0 0.0
    %300 = vmatpush1.msra.mxu0 0.0
    %301 = vmatprep.subr.mxu0 0.0
    %302 = vmatpush1.msra.mxu0 0.0
    %303 = vmatprep.subr.mxu0 0.0
    %304 = vmatpush1.msra.mxu0 0.0
    %305 = vmatprep.subr.mxu0 0.0
    %306 = vmatpush1.msra.mxu0 0.0
    %307 = vmatprep.subr.mxu0 0.0
    %308 = vmatpush1.msra.mxu0 0.0
    %309 = vmatprep.mubr.f32.mxu0 0.0
    %310 = vmatmul.mubr.f32.gmra.mrb[0].mxu0 %v231
    %v311 = vpop.f32.mrb[0].mxu0
    %v312 = vadd.f32 %v202, %v311
    %v313 = vpop.f32.mrb[0].mxu0
    %v314 = vadd.f32 %v204, %v313
    %315 = vmatprep.mubr.f32.mxu0 0.0
    %316 = vmatmul.mubr.f32.gmra.mrb[0].mxu0 %v234
    %v317 = vpop.f32.mrb[0].mxu0
    %v318 = vadd.f32 %v208, %v317
    %v319 = vpop.f32.mrb[0].mxu0
    %v320 = vadd.f32 %v210, %v319
    %321 = vmatprep.mubr.f32.mxu0 0.0
    %322 = vmatmul.mubr.f32.gmra.mrb[0].mxu0 %v237
    %v323 = vpop.f32.mrb[0].mxu0
    %v324 = vadd.f32 %v214, %v323
    %v325 = vpop.f32.mrb[0].mxu0
    %v326 = vadd.f32 %v216, %v325
    %327 = vmatprep.mubr.f32.mxu0 0.0
    %328 = vmatmul.mubr.f32.gmra.mrb[0].mxu0 %v240
    %v329 = vpop.f32.mrb[0].mxu0
    %v330 = vadd.f32 %v220, %v329
    %v331 = vpop.f32.mrb[0].mxu0
    %v332 = vadd.f32 %v222, %v331
    %333 = vmatprep.mubr.f32.mxu0 0.0
    %334 = vmatmul.mubr.f32.gmra.mrb[0].mxu0 %v243
    %v335 = vpop.f32.mrb[0].mxu0
    %v336 = vadd.f32 %v226, %v335
    %v337 = vpop.f32.mrb[0].mxu0
    %v338 = vadd.f32 %v228, %v337
    %339 = vdwg.mxu0
    %v340 = vld [vmem:[#allocation2 + $0x2] sm:$0xff]
    %v341 = vld [vmem:[#allocation2 + $0xa] sm:$0xff]
    %v342 = vld [vmem:[#allocation2 + $0x12] sm:$0xff]
    %v343 = vld [vmem:[#allocation2 + $0x1a] sm:$0xff]
    %v344 = vld [vmem:[#allocation2 + $0x22] sm:$0x3]
    %s345 = scalar_lea.vmem %s1, 256
    %v346 = vld [vmem:[%s345] sm:$0xff]
    %v347 = vld [vmem:[%s345 + $0x8] sm:$0xff]
    %v348 = vld [vmem:[%s345 + $0x10] sm:$0xff]
    %v349 = vld [vmem:[%s345 + $0x18] sm:$0xff]
    %v350 = vld [vmem:[%s345 + $0x20] sm:$0xff]
    %v351 = vld [vmem:[%s345 + $0x28] sm:$0xff]
    %v352 = vld [vmem:[%s345 + $0x30] sm:$0xff]
    %v353 = vld [vmem:[%s345 + $0x38] sm:$0xff]
    %v354 = vld [vmem:[%s345 + $0x40] sm:$0xff]
    %v355 = vld [vmem:[%s345 + $0x48] sm:$0xff]
    %v356 = vld [vmem:[%s345 + $0x50] sm:$0xff]
    %v357 = vld [vmem:[%s345 + $0x58] sm:$0xff]
    %v358 = vld [vmem:[%s345 + $0x60] sm:$0xff]
    %v359 = vld [vmem:[%s345 + $0x68] sm:$0xff]
    %v360 = vld [vmem:[%s345 + $0x70] sm:$0xff]
    %v361 = vld [vmem:[%s345 + $0x78] sm:$0xff]
    %v363 = vsel %vm61, %v340, 0
    %v366 = vsel %vm61, %v341, 0
    %v369 = vsel %vm61, %v342, 0
    %v372 = vsel %vm61, %v343, 0
    %v375 = vsel %vm61, %v344, 0
    %377 = vmatprep.subr.mxu0 %v347
    %378 = vmatpush1.msra.mxu0 %v346
    %379 = vmatprep.subr.mxu0 %v349
    %380 = vmatpush1.msra.mxu0 %v348
    %381 = vmatprep.subr.mxu0 %v351
    %382 = vmatpush1.msra.mxu0 %v350
    %383 = vmatprep.subr.mxu0 %v353
    %384 = vmatpush1.msra.mxu0 %v352
    %385 = vmatprep.subr.mxu0 %v355
    %386 = vmatpush1.msra.mxu0 %v354
    %387 = vmatprep.subr.mxu0 %v357
    %388 = vmatpush1.msra.mxu0 %v356
    %389 = vmatprep.subr.mxu0 %v359
    %390 = vmatpush1.msra.mxu0 %v358
    %391 = vmatprep.subr.mxu0 %v361
    %392 = vmatpush1.msra.mxu0 %v360
    %393 = vmatprep.subr.mxu0 0.0
    %394 = vmatpush1.msra.mxu0 0.0
    %395 = vmatprep.subr.mxu0 0.0
    %396 = vmatpush1.msra.mxu0 0.0
    %397 = vmatprep.subr.mxu0 0.0
    %398 = vmatpush1.msra.mxu0 0.0
    %399 = vmatprep.subr.mxu0 0.0
    %400 = vmatpush1.msra.mxu0 0.0
    %401 = vmatprep.subr.mxu0 0.0
    %402 = vmatpush1.msra.mxu0 0.0
    %403 = vmatprep.subr.mxu0 0.0
    %404 = vmatpush1.msra.mxu0 0.0
    %405 = vmatprep.subr.mxu0 0.0
    %406 = vmatpush1.msra.mxu0 0.0
    %407 = vmatprep.subr.mxu0 0.0
    %408 = vmatpush1.msra.mxu0 0.0
    %409 = vmatprep.subr.mxu0 0.0
    %410 = vmatpush1.msra.mxu0 0.0
    %411 = vmatprep.subr.mxu0 0.0
    %412 = vmatpush1.msra.mxu0 0.0
    %413 = vmatprep.subr.mxu0 0.0
    %414 = vmatpush1.msra.mxu0 0.0
    %415 = vmatprep.subr.mxu0 0.0
    %416 = vmatpush1.msra.mxu0 0.0
    %417 = vmatprep.subr.mxu0 0.0
    %418 = vmatpush1.msra.mxu0 0.0
    %419 = vmatprep.subr.mxu0 0.0
    %420 = vmatpush1.msra.mxu0 0.0
    %421 = vmatprep.subr.mxu0 0.0
    %422 = vmatpush1.msra.mxu0 0.0
    %423 = vmatprep.subr.mxu0 0.0
    %424 = vmatpush1.msra.mxu0 0.0
    %425 = vmatprep.subr.mxu0 0.0
    %426 = vmatpush1.msra.mxu0 0.0
    %427 = vmatprep.subr.mxu0 0.0
    %428 = vmatpush1.msra.mxu0 0.0
    %429 = vmatprep.subr.mxu0 0.0
    %430 = vmatpush1.msra.mxu0 0.0
    %431 = vmatprep.subr.mxu0 0.0
    %432 = vmatpush1.msra.mxu0 0.0
    %433 = vmatprep.subr.mxu0 0.0
    %434 = vmatpush1.msra.mxu0 0.0
    %435 = vmatprep.subr.mxu0 0.0
    %436 = vmatpush1.msra.mxu0 0.0
    %437 = vmatprep.subr.mxu0 0.0
    %438 = vmatpush1.msra.mxu0 0.0
    %439 = vmatprep.subr.mxu0 0.0
    %440 = vmatpush1.msra.mxu0 0.0
    %441 = vmatprep.mubr.f32.mxu0 0.0
    %442 = vmatmul.mubr.f32.gmra.mrb[0].mxu0 %v363
    %v443 = vpop.f32.mrb[0].mxu0
    %v444 = vadd.f32 0.0, %v443
    %v445 = vpop.f32.mrb[0].mxu0
    %v446 = vadd.f32 0.0, %v445
    %447 = vmatprep.mubr.f32.mxu0 0.0
    %448 = vmatmul.mubr.f32.gmra.mrb[0].mxu0 %v366
    %v449 = vpop.f32.mrb[0].mxu0
    %v450 = vadd.f32 0.0, %v449
    %v451 = vpop.f32.mrb[0].mxu0
    %v452 = vadd.f32 0.0, %v451
    %453 = vmatprep.mubr.f32.mxu0 0.0
    %454 = vmatmul.mubr.f32.gmra.mrb[0].mxu0 %v369
    %v455 = vpop.f32.mrb[0].mxu0
    %v456 = vadd.f32 0.0, %v455
    %v457 = vpop.f32.mrb[0].mxu0
    %v458 = vadd.f32 0.0, %v457
    %459 = vmatprep.mubr.f32.mxu0 0.0
    %460 = vmatmul.mubr.f32.gmra.mrb[0].mxu0 %v372
    %v461 = vpop.f32.mrb[0].mxu0
    %v462 = vadd.f32 0.0, %v461
    %v463 = vpop.f32.mrb[0].mxu0
    %v464 = vadd.f32 0.0, %v463
    %465 = vmatprep.mubr.f32.mxu0 0.0
    %466 = vmatmul.mubr.f32.gmra.mrb[0].mxu0 %v375
    %v467 = vpop.f32.mrb[0].mxu0
    %v468 = vadd.f32 0.0, %v467
    %v469 = vpop.f32.mrb[0].mxu0
    %v470 = vadd.f32 0.0, %v469
    %471 = vdwg.mxu0
    %v472 = vadd.f32 %v312, %v444
    %v473 = vadd.f32 %v314, %v446
    %v474 = vadd.f32 %v318, %v450
    %v475 = vadd.f32 %v320, %v452
    %v476 = vadd.f32 %v324, %v456
    %v477 = vadd.f32 %v326, %v458
    %v478 = vadd.f32 %v330, %v462
    %v479 = vadd.f32 %v332, %v464
    %v480 = vadd.f32 %v336, %v468
    %v481 = vadd.f32 %v338, %v470
    %v482 = vld [vmem:[%s2] sm:$0x3]
    %v484 = vlaneseq
    %v485 = vshrl.u32 %v484, 7
    %v486 = vsub.s32 0, %v485
    %v487 = vrot.slane %v482, %v486
    %v488 = vlaneseq
    %v489 = vshrl.u32 %v488, 7
    %v490 = vsub.s32 1, %v489
    %v491 = vrot.slane %v482, %v490
    %v494 = vadd.f32 %v472, %v487
    %v495 = vadd.f32 %v473, %v491
    %v496 = vadd.f32 %v474, %v487
    %v497 = vadd.f32 %v475, %v491
    %v498 = vadd.f32 %v476, %v487
    %v499 = vadd.f32 %v477, %v491
    %v500 = vadd.f32 %v478, %v487
    %v501 = vadd.f32 %v479, %v491
    %v502 = vadd.f32 %v480, %v487
    %v503 = vadd.f32 %v481, %v491
    %v504 = vmax.f32 %v494, 0.0
    %v505 = vmax.f32 %v495, 0.0
    %v506 = vmax.f32 %v496, 0.0
    %v507 = vmax.f32 %v497, 0.0
    %v508 = vmax.f32 %v498, 0.0
    %v509 = vmax.f32 %v499, 0.0
    %v510 = vmax.f32 %v500, 0.0
    %v511 = vmax.f32 %v501, 0.0
    %v512 = vmax.f32 %v502, 0.0
    %v513 = vmax.f32 %v503, 0.0
    %519 = vrot.lane.b32.xlu0 %v504, 88
    %v520 = vpop.permute.xlu0 %519
    %521 = vrot.lane.b32.xlu0 %v506, 88
    %v522 = vpop.permute.xlu0 %521
    %523 = vrot.lane.b32.xlu0 %v508, 88
    %v524 = vpop.permute.xlu0 %523
    %525 = vrot.lane.b32.xlu0 %v510, 88
    %v526 = vpop.permute.xlu0 %525
    %527 = vrot.lane.b32.xlu0 %v512, 88
    %v528 = vpop.permute.xlu0 %527
    %v534 = vmax.f32 %v504, %v520
    %v535 = vmax.f32 %v506, %v522
    %v536 = vmax.f32 %v508, %v524
    %v537 = vmax.f32 %v510, %v526
    %v538 = vmax.f32 %v512, %v528
    %539 = vrot.lane.b32.xlu0 %v504, 48
    %v540 = vpop.permute.xlu0 %539
    %541 = vrot.lane.b32.xlu0 %v506, 48
    %v542 = vpop.permute.xlu0 %541
    %543 = vrot.lane.b32.xlu0 %v508, 48
    %v544 = vpop.permute.xlu0 %543
    %545 = vrot.lane.b32.xlu0 %v510, 48
    %v546 = vpop.permute.xlu0 %545
    %547 = vrot.lane.b32.xlu0 %v512, 48
    %v548 = vpop.permute.xlu0 %547
    %v554 = vmax.f32 %v534, %v540
    %v555 = vmax.f32 %v535, %v542
    %v556 = vmax.f32 %v536, %v544
    %v557 = vmax.f32 %v537, %v546
    %v558 = vmax.f32 %v538, %v548
    %564 = vrot.lane.b32.xlu0 %v504, 8
    %v565 = vpop.permute.xlu0 %564
    %566 = vrot.lane.b32.xlu0 %v505, 8
    %v567 = vpop.permute.xlu0 %566
    %568 = vrot.lane.b32.xlu0 %v506, 8
    %v569 = vpop.permute.xlu0 %568
    %570 = vrot.lane.b32.xlu0 %v507, 8
    %v571 = vpop.permute.xlu0 %570
    %572 = vrot.lane.b32.xlu0 %v508, 8
    %v573 = vpop.permute.xlu0 %572
    %574 = vrot.lane.b32.xlu0 %v509, 8
    %v575 = vpop.permute.xlu0 %574
    %576 = vrot.lane.b32.xlu0 %v510, 8
    %v577 = vpop.permute.xlu0 %576
    %578 = vrot.lane.b32.xlu0 %v511, 8
    %v579 = vpop.permute.xlu0 %578
    %580 = vrot.lane.b32.xlu0 %v512, 8
    %v581 = vpop.permute.xlu0 %580
    %582 = vrot.lane.b32.xlu0 %v513, 8
    %v583 = vpop.permute.xlu0 %582
    %vm584 = vcmask 64512
    %v585 = vsel %vm584, %v565, %v567
    %v586 = vsel %vm584, %v569, %v571
    %v587 = vsel %vm584, %v573, %v575
    %v588 = vsel %vm584, %v577, %v579
    %v589 = vsel %vm584, %v581, %v583
    %v595 = vmax.f32 %v554, %v585
    %v596 = vmax.f32 %v555, %v586
    %v597 = vmax.f32 %v556, %v587
    %v598 = vmax.f32 %v557, %v588
    %v599 = vmax.f32 %v558, %v589
    %vm600 = vcmask 326656
    %601 = vst.msk [vmem:[#allocation3] sm:$0xff] %vm600, 0.0
    %602 = vst.msk [vmem:[#allocation3 + $0x8] sm:$0xff] %vm600, 0.0
    %603 = vst.msk [vmem:[#allocation3 + $0x10] sm:$0xff] %vm600, 0.0
    %604 = vst.msk [vmem:[#allocation3 + $0x18] sm:$0xff] %vm600, 0.0
    %605 = vst.msk [vmem:[#allocation3 + $0x20] sm:$0xff] %vm600, 0.0
    %606 = vst.msk [vmem:[#allocation3 + $0x28] sm:$0xff] %vm600, 0.0
    %607 = vst.msk [vmem:[#allocation3 + $0x30] sm:$0xff] %vm600, 0.0
    %608 = vst.msk [vmem:[#allocation3 + $0x38] sm:$0xff] %vm600, 0.0
    %609 = vst.msk [vmem:[#allocation3 + $0x40] sm:$0xff] %vm600, 0.0
    %610 = vst.msk [vmem:[#allocation3 + $0xa] sm:$0xff] %vm600, %v595
    %611 = vst.msk [vmem:[#allocation3 + $0x12] sm:$0xff] %vm600, %v596
    %vm612 = vcmask 326658
    %613 = vst.msk [vmem:[#allocation3 + $0x2c] sm:$0xfc] %vm612, %v597
    %614 = vst.msk [vmem:[#allocation3 + $0x34] sm:$0xff] %vm600, %v598
    %vm615 = vcmask 320512
    %616 = vst.msk [vmem:[#allocation3 + $0x3c] sm:$0x3] %vm615, %v599
    %v617 = vld [vmem:[#allocation3] ss:$4 sm:$0xff]
    %s618 = scalar_lea.vmem [#allocation3], 32
    %v619 = vld [vmem:[%s618] ss:$4 sm:$0xff]
    %s620 = scalar_lea.vmem [#allocation3], 64
    %v621 = vld [vmem:[%s620] ss:$4 sm:$0x3]
    %s622 = scalar_lea.vmem [#allocation3], 1
    %v623 = vld [vmem:[%s622] ss:$4 sm:$0xff]
    %s624 = scalar_lea.vmem [#allocation3], 33
    %v625 = vld [vmem:[%s624] ss:$4 sm:$0xff]
    %s626 = scalar_lea.vmem [#allocation3], 65
    %v627 = vld [vmem:[%s626] ss:$4 sm:$0x3]
    %s628 = scalar_lea.vmem [#allocation3], 2
    %v629 = vld [vmem:[%s628] ss:$4 sm:$0xff]
    %s630 = scalar_lea.vmem [#allocation3], 34
    %v631 = vld [vmem:[%s630] ss:$4 sm:$0xff]
    %s632 = scalar_lea.vmem [#allocation3], 66
    %v633 = vld [vmem:[%s632] ss:$4 sm:$0x3]
    %s634 = scalar_lea.vmem [#allocation3], 3
    %v635 = vld [vmem:[%s634] ss:$4 sm:$0xff]
    %s636 = scalar_lea.vmem [#allocation3], 35
    %v637 = vld [vmem:[%s636] ss:$4 sm:$0xff]
    %s638 = scalar_lea.vmem [#allocation3], 67
    %v639 = vld [vmem:[%s638] ss:$4 sm:$0x3]
    %v640 = vmax.f32 %v617, %v623
    %v641 = vmax.f32 %v619, %v625
    %v642 = vmax.f32 %v621, %v627
    %v643 = vmax.f32 %v640, %v629
    %v644 = vmax.f32 %v641, %v631
    %v645 = vmax.f32 %v642, %v633
    %v646 = vmax.f32 %v643, %v635
    %v647 = vmax.f32 %v644, %v637
    %v648 = vmax.f32 %v645, %v639
    %v649 = vld [vmem:[#allocation6] sm:$0xff]
    %v650 = vld [vmem:[#allocation6 + $0x8] sm:$0xff]
    %v651 = vld [vmem:[#allocation6 + $0x10] sm:$0xff]
    %v652 = vld [vmem:[#allocation6 + $0x18] sm:$0xff]
    %v653 = vld [vmem:[#allocation6 + $0x20] sm:$0xff]
    %s654 = scalar_lea.vmem [#allocation6], 40
    %v655 = vld [vmem:[%s654] sm:$0xff]
    %v656 = vld [vmem:[%s654 + $0x8] sm:$0xff]
    %v657 = vld [vmem:[%s654 + $0x10] sm:$0xff]
    %v658 = vld [vmem:[%s654 + $0x18] sm:$0xff]
    %v659 = vld [vmem:[%s654 + $0x20] sm:$0xff]
    %vm662 = vcmask 1046528
    %v663 = vrot.slane %v646, 1
    %v664 = vrot.slane %v647, 1
    %v665 = vsel %vm662, %v663, %v664
    %v666 = vsel %vm600, %v665, 0
    %v668 = vsel %vm600, %v664, 0
    %670 = vmatprep.subr.mxu0 0.0
    %671 = vmatpush1.msra.mxu0 %v655
    %672 = vmatprep.subr.mxu0 0.0
    %673 = vmatpush1.msra.mxu0 %v656
    %674 = vmatprep.subr.mxu0 0.0
    %675 = vmatpush1.msra.mxu0 %v657
    %676 = vmatprep.subr.mxu0 0.0
    %677 = vmatpush1.msra.mxu0 %v658
    %678 = vmatprep.subr.mxu0 0.0
    %679 = vmatpush1.msra.mxu0 %v659
    %680 = vmatprep.subr.mxu0 0.0
    %681 = vmatpush1.msra.mxu0 0.0
    %682 = vmatprep.subr.mxu0 0.0
    %683 = vmatpush1.msra.mxu0 0.0
    %684 = vmatprep.subr.mxu0 0.0
    %685 = vmatpush1.msra.mxu0 0.0
    %686 = vmatprep.subr.mxu0 0.0
    %687 = vmatpush1.msra.mxu0 0.0
    %688 = vmatprep.subr.mxu0 0.0
    %689 = vmatpush1.msra.mxu0 0.0
    %690 = vmatprep.subr.mxu0 0.0
    %691 = vmatpush1.msra.mxu0 0.0
    %692 = vmatprep.subr.mxu0 0.0
    %693 = vmatpush1.msra.mxu0 0.0
    %694 = vmatprep.subr.mxu0 0.0
    %695 = vmatpush1.msra.mxu0 0.0
    %696 = vmatprep.subr.mxu0 0.0
    %697 = vmatpush1.msra.mxu0 0.0
    %698 = vmatprep.subr.mxu0 0.0
    %699 = vmatpush1.msra.mxu0 0.0
    %700 = vmatprep.subr.mxu0 0.0
    %701 = vmatpush1.msra.mxu0 0.0
    %702 = vmatprep.subr.mxu0 0.0
    %703 = vmatpush1.msra.mxu0 0.0
    %704 = vmatprep.subr.mxu0 0.0
    %705 = vmatpush1.msra.mxu0 0.0
    %706 = vmatprep.subr.mxu0 0.0
    %707 = vmatpush1.msra.mxu0 0.0
    %708 = vmatprep.subr.mxu0 0.0
    %709 = vmatpush1.msra.mxu0 0.0
    %710 = vmatprep.subr.mxu0 0.0
    %711 = vmatpush1.msra.mxu0 0.0
    %712 = vmatprep.subr.mxu0 0.0
    %713 = vmatpush1.msra.mxu0 0.0
    %714 = vmatprep.subr.mxu0 0.0
    %715 = vmatpush1.msra.mxu0 0.0
    %716 = vmatprep.subr.mxu0 0.0
    %717 = vmatpush1.msra.mxu0 0.0
    %718 = vmatprep.subr.mxu0 0.0
    %719 = vmatpush1.msra.mxu0 0.0
    %720 = vmatprep.subr.mxu0 0.0
    %721 = vmatpush1.msra.mxu0 0.0
    %722 = vmatprep.subr.mxu0 0.0
    %723 = vmatpush1.msra.mxu0 0.0
    %724 = vmatprep.subr.mxu0 0.0
    %725 = vmatpush1.msra.mxu0 0.0
    %726 = vmatprep.subr.mxu0 0.0
    %727 = vmatpush1.msra.mxu0 0.0
    %728 = vmatprep.subr.mxu0 0.0
    %729 = vmatpush1.msra.mxu0 0.0
    %730 = vmatprep.subr.mxu0 0.0
    %731 = vmatpush1.msra.mxu0 0.0
    %732 = vmatprep.subr.mxu0 0.0
    %733 = vmatpush1.msra.mxu0 0.0
    %734 = vmatprep.mubr.f32.mxu0 0.0
    %735 = vmatmul.mubr.f32.gmra.mrb[0].mxu0 %v666
    %v736 = vpop.f32.mrb[0].mxu0
    %v737 = vadd.f32 0.0, %v736
    %v738 = vpop.f32.mrb[0].mxu0
    %739 = vmatprep.mubr.f32.mxu0 0.0
    %740 = vmatmul.mubr.f32.gmra.mrb[0].mxu0 %v668
    %v741 = vpop.f32.mrb[0].mxu0
    %v742 = vadd.f32 0.0, %v741
    %v743 = vpop.f32.mrb[0].mxu0
    %744 = vdwg.mxu0
    %v745 = vsel %vm600, %v646, 0
    %v747 = vsel %vm600, %v647, 0
    %749 = vmatprep.subr.mxu0 0.0
    %750 = vmatpush1.msra.mxu0 %v649
    %751 = vmatprep.subr.mxu0 0.0
    %752 = vmatpush1.msra.mxu0 %v650
    %753 = vmatprep.subr.mxu0 0.0
    %754 = vmatpush1.msra.mxu0 %v651
    %755 = vmatprep.subr.mxu0 0.0
    %756 = vmatpush1.msra.mxu0 %v652
    %757 = vmatprep.subr.mxu0 0.0
    %758 = vmatpush1.msra.mxu0 %v653
    %759 = vmatprep.subr.mxu0 0.0
    %760 = vmatpush1.msra.mxu0 0.0
    %761 = vmatprep.subr.mxu0 0.0
    %762 = vmatpush1.msra.mxu0 0.0
    %763 = vmatprep.subr.mxu0 0.0
    %764 = vmatpush1.msra.mxu0 0.0
    %765 = vmatprep.subr.mxu0 0.0
    %766 = vmatpush1.msra.mxu0 0.0
    %767 = vmatprep.subr.mxu0 0.0
    %768 = vmatpush1.msra.mxu0 0.0
    %769 = vmatprep.subr.mxu0 0.0
    %770 = vmatpush1.msra.mxu0 0.0
    %771 = vmatprep.subr.mxu0 0.0
    %772 = vmatpush1.msra.mxu0 0.0
    %773 = vmatprep.subr.mxu0 0.0
    %774 = vmatpush1.msra.mxu0 0.0
    %775 = vmatprep.subr.mxu0 0.0
    %776 = vmatpush1.msra.mxu0 0.0
    %777 = vmatprep.subr.mxu0 0.0
    %778 = vmatpush1.msra.mxu0 0.0
    %779 = vmatprep.subr.mxu0 0.0
    %780 = vmatpush1.msra.mxu0 0.0
    %781 = vmatprep.subr.mxu0 0.0
    %782 = vmatpush1.msra.mxu0 0.0
    %783 = vmatprep.subr.mxu0 0.0
    %784 = vmatpush1.msra.mxu0 0.0
    %785 = vmatprep.subr.mxu0 0.0
    %786 = vmatpush1.msra.mxu0 0.0
    %787 = vmatprep.subr.mxu0 0.0
    %788 = vmatpush1.msra.mxu0 0.0
    %789 = vmatprep.subr.mxu0 0.0
    %790 = vmatpush1.msra.mxu0 0.0
    %791 = vmatprep.subr.mxu0 0.0
    %792 = vmatpush1.msra.mxu0 0.0
    %793 = vmatprep.subr.mxu0 0.0
    %794 = vmatpush1.msra.mxu0 0.0
    %795 = vmatprep.subr.mxu0 0.0
    %796 = vmatpush1.msra.mxu0 0.0
    %797 = vmatprep.subr.mxu0 0.0
    %798 = vmatpush1.msra.mxu0 0.0
    %799 = vmatprep.subr.mxu0 0.0
    %800 = vmatpush1.msra.mxu0 0.0
    %801 = vmatprep.subr.mxu0 0.0
    %802 = vmatpush1.msra.mxu0 0.0
    %803 = vmatprep.subr.mxu0 0.0
    %804 = vmatpush1.msra.mxu0 0.0
    %805 = vmatprep.subr.mxu0 0.0
    %806 = vmatpush1.msra.mxu0 0.0
    %807 = vmatprep.subr.mxu0 0.0
    %808 = vmatpush1.msra.mxu0 0.0
    %809 = vmatprep.subr.mxu0 0.0
    %810 = vmatpush1.msra.mxu0 0.0
    %811 = vmatprep.subr.mxu0 0.0
    %812 = vmatpush1.msra.mxu0 0.0
    %813 = vmatprep.mubr.f32.mxu0 0.0
    %814 = vmatmul.mubr.f32.gmra.mrb[0].mxu0 %v745
    %v815 = vpop.f32.mrb[0].mxu0
    %v816 = vadd.f32 %v737, %v815
    %v817 = vpop.f32.mrb[0].mxu0
    %818 = vmatprep.mubr.f32.mxu0 0.0
    %819 = vmatmul.mubr.f32.gmra.mrb[0].mxu0 %v747
    %v820 = vpop.f32.mrb[0].mxu0
    %v821 = vadd.f32 %v742, %v820
    %v822 = vpop.f32.mrb[0].mxu0
    %823 = vdwg.mxu0
    %s824 = scalar_lea.vmem [#allocation6], 80
    %v825 = vld [vmem:[%s824] sm:$0xff]
    %v826 = vld [vmem:[%s824 + $0x8] sm:$0xff]
    %v827 = vld [vmem:[%s824 + $0x10] sm:$0xff]
    %v828 = vld [vmem:[%s824 + $0x18] sm:$0xff]
    %v829 = vld [vmem:[%s824 + $0x20] sm:$0xff]
    %vm830 = vcmask 1045504
    %v831 = vrot.slane %v646, 2
    %v832 = vrot.slane %v647, 2
    %v833 = vsel %vm830, %v831, %v832
    %v834 = vsel %vm600, %v833, 0
    %v836 = vsel %vm600, %v832, 0
    %838 = vmatprep.subr.mxu0 0.0
    %839 = vmatpush1.msra.mxu0 %v825
    %840 = vmatprep.subr.mxu0 0.0
    %841 = vmatpush1.msra.mxu0 %v826
    %842 = vmatprep.subr.mxu0 0.0
    %843 = vmatpush1.msra.mxu0 %v827
    %844 = vmatprep.subr.mxu0 0.0
    %845 = vmatpush1.msra.mxu0 %v828
    %846 = vmatprep.subr.mxu0 0.0
    %847 = vmatpush1.msra.mxu0 %v829
    %848 = vmatprep.subr.mxu0 0.0
    %849 = vmatpush1.msra.mxu0 0.0
    %850 = vmatprep.subr.mxu0 0.0
    %851 = vmatpush1.msra.mxu0 0.0
    %852 = vmatprep.subr.mxu0 0.0
    %853 = vmatpush1.msra.mxu0 0.0
    %854 = vmatprep.subr.mxu0 0.0
    %855 = vmatpush1.msra.mxu0 0.0
    %856 = vmatprep.subr.mxu0 0.0
    %857 = vmatpush1.msra.mxu0 0.0
    %858 = vmatprep.subr.mxu0 0.0
    %859 = vmatpush1.msra.mxu0 0.0
    %860 = vmatprep.subr.mxu0 0.0
    %861 = vmatpush1.msra.mxu0 0.0
    %862 = vmatprep.subr.mxu0 0.0
    %863 = vmatpush1.msra.mxu0 0.0
    %864 = vmatprep.subr.mxu0 0.0
    %865 = vmatpush1.msra.mxu0 0.0
    %866 = vmatprep.subr.mxu0 0.0
    %867 = vmatpush1.msra.mxu0 0.0
    %868 = vmatprep.subr.mxu0 0.0
    %869 = vmatpush1.msra.mxu0 0.0
    %870 = vmatprep.subr.mxu0 0.0
    %871 = vmatpush1.msra.mxu0 0.0
    %872 = vmatprep.subr.mxu0 0.0
    %873 = vmatpush1.msra.mxu0 0.0
    %874 = vmatprep.subr.mxu0 0.0
    %875 = vmatpush1.msra.mxu0 0.0
    %876 = vmatprep.subr.mxu0 0.0
    %877 = vmatpush1.msra.mxu0 0.0
    %878 = vmatprep.subr.mxu0 0.0
    %879 = vmatpush1.msra.mxu0 0.0
    %880 = vmatprep.subr.mxu0 0.0
    %881 = vmatpush1.msra.mxu0 0.0
    %882 = vmatprep.subr.mxu0 0.0
    %883 = vmatpush1.msra.mxu0 0.0
    %884 = vmatprep.subr.mxu0 0.0
    %885 = vmatpush1.msra.mxu0 0.0
    %886 = vmatprep.subr.mxu0 0.0
    %887 = vmatpush1.msra.mxu0 0.0
    %888 = vmatprep.subr.mxu0 0.0
    %889 = vmatpush1.msra.mxu0 0.0
    %890 = vmatprep.subr.mxu0 0.0
    %891 = vmatpush1.msra.mxu0 0.0
    %892 = vmatprep.subr.mxu0 0.0
    %893 = vmatpush1.msra.mxu0 0.0
    %894 = vmatprep.subr.mxu0 0.0
    %895 = vmatpush1.msra.mxu0 0.0
    %896 = vmatprep.subr.mxu0 0.0
    %897 = vmatpush1.msra.mxu0 0.0
    %898 = vmatprep.subr.mxu0 0.0
    %899 = vmatpush1.msra.mxu0 0.0
    %900 = vmatprep.subr.mxu0 0.0
    %901 = vmatpush1.msra.mxu0 0.0
    %902 = vmatprep.mubr.f32.mxu0 0.0
    %903 = vmatmul.mubr.f32.gmra.mrb[0].mxu0 %v834
    %v904 = vpop.f32.mrb[0].mxu0
    %v905 = vadd.f32 0.0, %v904
    %v906 = vpop.f32.mrb[0].mxu0
    %907 = vmatprep.mubr.f32.mxu0 0.0
    %908 = vmatmul.mubr.f32.gmra.mrb[0].mxu0 %v836
    %v909 = vpop.f32.mrb[0].mxu0
    %v910 = vadd.f32 0.0, %v909
    %v911 = vpop.f32.mrb[0].mxu0
    %912 = vdwg.mxu0
    %v913 = vadd.f32 %v816, %v905
    %v914 = vadd.f32 %v821, %v910
    %s915 = scalar_lea.vmem [#allocation6], 120
    %v916 = vld [vmem:[%s915] sm:$0xff]
    %v917 = vld [vmem:[%s915 + $0x8] sm:$0xff]
    %v918 = vld [vmem:[%s915 + $0x10] sm:$0xff]
    %v919 = vld [vmem:[%s915 + $0x18] sm:$0xff]
    %v920 = vld [vmem:[%s915 + $0x20] sm:$0xff]
    %vm922 = vcmask 1044480
    %v923 = vrot.slane %v646, 3
    %v924 = vrot.slane %v647, 3
    %v925 = vsel %vm922, %v923, %v924
    %v926 = vrot.slane %v648, 3
    %v927 = vsel %vm922, %v924, %v926
    %v928 = vsel %vm600, %v925, 0
    %v930 = vsel %vm600, %v927, 0
    %932 = vmatprep.subr.mxu0 0.0
    %933 = vmatpush1.msra.mxu0 %v916
    %934 = vmatprep.subr.mxu0 0.0
    %935 = vmatpush1.msra.mxu0 %v917
    %936 = vmatprep.subr.mxu0 0.0
    %937 = vmatpush1.msra.mxu0 %v918
    %938 = vmatprep.subr.mxu0 0.0
    %939 = vmatpush1.msra.mxu0 %v919
    %940 = vmatprep.subr.mxu0 0.0
    %941 = vmatpush1.msra.mxu0 %v920
    %942 = vmatprep.subr.mxu0 0.0
    %943 = vmatpush1.msra.mxu0 0.0
    %944 = vmatprep.subr.mxu0 0.0
    %945 = vmatpush1.msra.mxu0 0.0
    %946 = vmatprep.subr.mxu0 0.0
    %947 = vmatpush1.msra.mxu0 0.0
    %948 = vmatprep.subr.mxu0 0.0
    %949 = vmatpush1.msra.mxu0 0.0
    %950 = vmatprep.subr.mxu0 0.0
    %951 = vmatpush1.msra.mxu0 0.0
    %952 = vmatprep.subr.mxu0 0.0
    %953 = vmatpush1.msra.mxu0 0.0
    %954 = vmatprep.subr.mxu0 0.0
    %955 = vmatpush1.msra.mxu0 0.0
    %956 = vmatprep.subr.mxu0 0.0
    %957 = vmatpush1.msra.mxu0 0.0
    %958 = vmatprep.subr.mxu0 0.0
    %959 = vmatpush1.msra.mxu0 0.0
    %960 = vmatprep.subr.mxu0 0.0
    %961 = vmatpush1.msra.mxu0 0.0
    %962 = vmatprep.subr.mxu0 0.0
    %963 = vmatpush1.msra.mxu0 0.0
    %964 = vmatprep.subr.mxu0 0.0
    %965 = vmatpush1.msra.mxu0 0.0
    %966 = vmatprep.subr.mxu0 0.0
    %967 = vmatpush1.msra.mxu0 0.0
    %968 = vmatprep.subr.mxu0 0.0
    %969 = vmatpush1.msra.mxu0 0.0
    %970 = vmatprep.subr.mxu0 0.0
    %971 = vmatpush1.msra.mxu0 0.0
    %972 = vmatprep.subr.mxu0 0.0
    %973 = vmatpush1.msra.mxu0 0.0
    %974 = vmatprep.subr.mxu0 0.0
    %975 = vmatpush1.msra.mxu0 0.0
    %976 = vmatprep.subr.mxu0 0.0
    %977 = vmatpush1.msra.mxu0 0.0
    %978 = vmatprep.subr.mxu0 0.0
    %979 = vmatpush1.msra.mxu0 0.0
    %980 = vmatprep.subr.mxu0 0.0
    %981 = vmatpush1.msra.mxu0 0.0
    %982 = vmatprep.subr.mxu0 0.0
    %983 = vmatpush1.msra.mxu0 0.0
    %984 = vmatprep.subr.mxu0 0.0
    %985 = vmatpush1.msra.mxu0 0.0
    %986 = vmatprep.subr.mxu0 0.0
    %987 = vmatpush1.msra.mxu0 0.0
    %988 = vmatprep.subr.mxu0 0.0
    %989 = vmatpush1.msra.mxu0 0.0
    %990 = vmatprep.subr.mxu0 0.0
    %991 = vmatpush1.msra.mxu0 0.0
    %992 = vmatprep.subr.mxu0 0.0
    %993 = vmatpush1.msra.mxu0 0.0
    %994 = vmatprep.subr.mxu0 0.0
    %995 = vmatpush1.msra.mxu0 0.0
    %996 = vmatprep.mubr.f32.mxu0 0.0
    %997 = vmatmul.mubr.f32.gmra.mrb[0].mxu0 %v928
    %v998 = vpop.f32.mrb[0].mxu0
    %v999 = vadd.f32 0.0, %v998
    %v1000 = vpop.f32.mrb[0].mxu0
    %1001 = vmatprep.mubr.f32.mxu0 0.0
    %1002 = vmatmul.mubr.f32.gmra.mrb[0].mxu0 %v930
    %v1003 = vpop.f32.mrb[0].mxu0
    %v1004 = vadd.f32 0.0, %v1003
    %v1005 = vpop.f32.mrb[0].mxu0
    %1006 = vdwg.mxu0
    %v1007 = vadd.f32 %v913, %v999
    %v1008 = vadd.f32 %v914, %v1004
    %s1009 = scalar_lea.vmem [#allocation6], 160
    %v1010 = vld [vmem:[%s1009] sm:$0xff]
    %v1011 = vld [vmem:[%s1009 + $0x8] sm:$0xff]
    %v1012 = vld [vmem:[%s1009 + $0x10] sm:$0xff]
    %v1013 = vld [vmem:[%s1009 + $0x18] sm:$0xff]
    %v1014 = vld [vmem:[%s1009 + $0x20] sm:$0xff]
    %vm1015 = vcmask 1043456
    %v1016 = vrot.slane %v646, 4
    %v1017 = vrot.slane %v647, 4
    %v1018 = vsel %vm1015, %v1016, %v1017
    %v1019 = vrot.slane %v648, 4
    %v1020 = vsel %vm1015, %v1017, %v1019
    %v1021 = vsel %vm600, %v1018, 0
    %v1023 = vsel %vm600, %v1020, 0
    %1025 = vmatprep.subr.mxu0 0.0
    %1026 = vmatpush1.msra.mxu0 %v1010
    %1027 = vmatprep.subr.mxu0 0.0
    %1028 = vmatpush1.msra.mxu0 %v1011
    %1029 = vmatprep.subr.mxu0 0.0
    %1030 = vmatpush1.msra.mxu0 %v1012
    %1031 = vmatprep.subr.mxu0 0.0
    %1032 = vmatpush1.msra.mxu0 %v1013
    %1033 = vmatprep.subr.mxu0 0.0
    %1034 = vmatpush1.msra.mxu0 %v1014
    %1035 = vmatprep.subr.mxu0 0.0
    %1036 = vmatpush1.msra.mxu0 0.0
    %1037 = vmatprep.subr.mxu0 0.0
    %1038 = vmatpush1.msra.mxu0 0.0
    %1039 = vmatprep.subr.mxu0 0.0
    %1040 = vmatpush1.msra.mxu0 0.0
    %1041 = vmatprep.subr.mxu0 0.0
    %1042 = vmatpush1.msra.mxu0 0.0
    %1043 = vmatprep.subr.mxu0 0.0
    %1044 = vmatpush1.msra.mxu0 0.0
    %1045 = vmatprep.subr.mxu0 0.0
    %1046 = vmatpush1.msra.mxu0 0.0
    %1047 = vmatprep.subr.mxu0 0.0
    %1048 = vmatpush1.msra.mxu0 0.0
    %1049 = vmatprep.subr.mxu0 0.0
    %1050 = vmatpush1.msra.mxu0 0.0
    %1051 = vmatprep.subr.mxu0 0.0
    %1052 = vmatpush1.msra.mxu0 0.0
    %1053 = vmatprep.subr.mxu0 0.0
    %1054 = vmatpush1.msra.mxu0 0.0
    %1055 = vmatprep.subr.mxu0 0.0
    %1056 = vmatpush1.msra.mxu0 0.0
    %1057 = vmatprep.subr.mxu0 0.0
    %1058 = vmatpush1.msra.mxu0 0.0
    %1059 = vmatprep.subr.mxu0 0.0
    %1060 = vmatpush1.msra.mxu0 0.0
    %1061 = vmatprep.subr.mxu0 0.0
    %1062 = vmatpush1.msra.mxu0 0.0
    %1063 = vmatprep.subr.mxu0 0.0
    %1064 = vmatpush1.msra.mxu0 0.0
    %1065 = vmatprep.subr.mxu0 0.0
    %1066 = vmatpush1.msra.mxu0 0.0
    %1067 = vmatprep.subr.mxu0 0.0
    %1068 = vmatpush1.msra.mxu0 0.0
    %1069 = vmatprep.subr.mxu0 0.0
    %1070 = vmatpush1.msra.mxu0 0.0
    %1071 = vmatprep.subr.mxu0 0.0
    %1072 = vmatpush1.msra.mxu0 0.0
    %1073 = vmatprep.subr.mxu0 0.0
    %1074 = vmatpush1.msra.mxu0 0.0
    %1075 = vmatprep.subr.mxu0 0.0
    %1076 = vmatpush1.msra.mxu0 0.0
    %1077 = vmatprep.subr.mxu0 0.0
    %1078 = vmatpush1.msra.mxu0 0.0
    %1079 = vmatprep.subr.mxu0 0.0
    %1080 = vmatpush1.msra.mxu0 0.0
    %1081 = vmatprep.subr.mxu0 0.0
    %1082 = vmatpush1.msra.mxu0 0.0
    %1083 = vmatprep.subr.mxu0 0.0
    %1084 = vmatpush1.msra.mxu0 0.0
    %1085 = vmatprep.subr.mxu0 0.0
    %1086 = vmatpush1.msra.mxu0 0.0
    %1087 = vmatprep.subr.mxu0 0.0
    %1088 = vmatpush1.msra.mxu0 0.0
    %1089 = vmatprep.mubr.f32.mxu0 0.0
    %1090 = vmatmul.mubr.f32.gmra.mrb[0].mxu0 %v1021
    %v1091 = vpop.f32.mrb[0].mxu0
    %v1092 = vadd.f32 0.0, %v1091
    %v1093 = vpop.f32.mrb[0].mxu0
    %1094 = vmatprep.mubr.f32.mxu0 0.0
    %1095 = vmatmul.mubr.f32.gmra.mrb[0].mxu0 %v1023
    %v1096 = vpop.f32.mrb[0].mxu0
    %v1097 = vadd.f32 0.0, %v1096
    %v1098 = vpop.f32.mrb[0].mxu0
    %1099 = vdwg.mxu0
    %v1100 = vadd.f32 %v1007, %v1092
    %v1101 = vadd.f32 %v1008, %v1097
    %v1102 = vld [vmem:[%s4] sm:$0x1]
    %v1104 = vlaneseq
    %v1105 = vshrl.u32 %v1104, 7
    %v1106 = vsub.s32 0, %v1105
    %v1107 = vrot.slane %v1102, %v1106
    %v1109 = vadd.f32 %v1100, %v1107
    %v1110 = vadd.f32 %v1101, %v1107
    %v1111 = vmax.f32 %v1109, 0.0
    %v1112 = vmax.f32 %v1110, 0.0
    %1115 = vrot.lane.b32.xlu0 %v1111, 96
    %v1116 = vpop.permute.xlu0 %1115
    %1117 = vrot.lane.b32.xlu0 %v1112, 96
    %v1118 = vpop.permute.xlu0 %1117
    %v1121 = vmax.f32 %v1111, %v1116
    %v1122 = vmax.f32 %v1112, %v1118
    %1123 = vrot.lane.b32.xlu0 %v1111, 64
    %v1124 = vpop.permute.xlu0 %1123
    %1125 = vrot.lane.b32.xlu0 %v1112, 64
    %v1126 = vpop.permute.xlu0 %1125
    %v1129 = vmax.f32 %v1121, %v1124
    %v1130 = vmax.f32 %v1122, %v1126
    %1131 = vrot.lane.b32.xlu0 %v1111, 32
    %v1132 = vpop.permute.xlu0 %1131
    %1133 = vrot.lane.b32.xlu0 %v1112, 32
    %v1134 = vpop.permute.xlu0 %1133
    %v1137 = vmax.f32 %v1129, %v1132
    %v1138 = vmax.f32 %v1130, %v1134
    %vm1139 = vcmask 261120
    %1140 = vst.msk [vmem:[#allocation4] sm:$0xff] %vm1139, 0.0
    %1141 = vst.msk [vmem:[#allocation4 + $0x8] sm:$0xff] %vm1139, 0.0
    %1142 = vst.msk [vmem:[#allocation4 + $0x10] sm:$0xff] %vm1139, 0.0
    %1143 = vst.msk [vmem:[#allocation4 + $0x18] sm:$0xff] %vm1139, 0.0
    %vm1144 = vcmask 258048
    %1145 = vst.msk [vmem:[#allocation4 + $0x6] sm:$0x1f] %vm1144, %v1137
    %vm1146 = vcmask 259073
    %1147 = vst.msk [vmem:[#allocation4 + $0x15] sm:$0x3e] %vm1146, %v1138
    %v1148 = vld [vmem:[#allocation4] ss:$4 sm:$0xff]
    %s1149 = scalar_lea.vmem [#allocation4], 1
    %v1150 = vld [vmem:[%s1149] ss:$4 sm:$0xff]
    %s1151 = scalar_lea.vmem [#allocation4], 2
    %v1152 = vld [vmem:[%s1151] ss:$4 sm:$0xff]
    %s1153 = scalar_lea.vmem [#allocation4], 3
    %v1154 = vld [vmem:[%s1153] ss:$4 sm:$0xff]
    %v1155 = vmax.f32 %v1148, %v1150
    %v1156 = vmax.f32 %v1155, %v1152
    %v1157 = vmax.f32 %v1156, %v1154
    %v1158 = vld [vmem:[#allocation9] sm:$0xff]
    %v1159 = vld [vmem:[#allocation9 + $0x8] sm:$0xff]
    %v1160 = vld [vmem:[#allocation9 + $0x10] sm:$0xff]
    %v1161 = vld [vmem:[#allocation9 + $0x18] sm:$0xff]
    %s1162 = scalar_lea.vmem [#allocation9], 32
    %v1163 = vld [vmem:[%s1162] sm:$0xff]
    %v1164 = vld [vmem:[%s1162 + $0x8] sm:$0xff]
    %v1165 = vld [vmem:[%s1162 + $0x10] sm:$0xff]
    %v1166 = vld [vmem:[%s1162 + $0x18] sm:$0xff]
    %v1168 = vrot.slane %v1157, 1
    %v1169 = vsel %vm1139, %v1168, 0
    %1171 = vmatprep.subr.mxu0 0.0
    %1172 = vmatpush1.msra.mxu0 %v1163
    %1173 = vmatprep.subr.mxu0 0.0
    %1174 = vmatpush1.msra.mxu0 %v1164
    %1175 = vmatprep.subr.mxu0 0.0
    %1176 = vmatpush1.msra.mxu0 %v1165
    %1177 = vmatprep.subr.mxu0 0.0
    %1178 = vmatpush1.msra.mxu0 %v1166
    %1179 = vmatprep.subr.mxu0 0.0
    %1180 = vmatpush1.msra.mxu0 0.0
    %1181 = vmatprep.subr.mxu0 0.0
    %1182 = vmatpush1.msra.mxu0 0.0
    %1183 = vmatprep.subr.mxu0 0.0
    %1184 = vmatpush1.msra.mxu0 0.0
    %1185 = vmatprep.subr.mxu0 0.0
    %1186 = vmatpush1.msra.mxu0 0.0
    %1187 = vmatprep.subr.mxu0 0.0
    %1188 = vmatpush1.msra.mxu0 0.0
    %1189 = vmatprep.subr.mxu0 0.0
    %1190 = vmatpush1.msra.mxu0 0.0
    %1191 = vmatprep.subr.mxu0 0.0
    %1192 = vmatpush1.msra.mxu0 0.0
    %1193 = vmatprep.subr.mxu0 0.0
    %1194 = vmatpush1.msra.mxu0 0.0
    %1195 = vmatprep.subr.mxu0 0.0
    %1196 = vmatpush1.msra.mxu0 0.0
    %1197 = vmatprep.subr.mxu0 0.0
    %1198 = vmatpush1.msra.mxu0 0.0
    %1199 = vmatprep.subr.mxu0 0.0
    %1200 = vmatpush1.msra.mxu0 0.0
    %1201 = vmatprep.subr.mxu0 0.0
    %1202 = vmatpush1.msra.mxu0 0.0
    %1203 = vmatprep.subr.mxu0 0.0
    %1204 = vmatpush1.msra.mxu0 0.0
    %1205 = vmatprep.subr.mxu0 0.0
    %1206 = vmatpush1.msra.mxu0 0.0
    %1207 = vmatprep.subr.mxu0 0.0
    %1208 = vmatpush1.msra.mxu0 0.0
    %1209 = vmatprep.subr.mxu0 0.0
    %1210 = vmatpush1.msra.mxu0 0.0
    %1211 = vmatprep.subr.mxu0 0.0
    %1212 = vmatpush1.msra.mxu0 0.0
    %1213 = vmatprep.subr.mxu0 0.0
    %1214 = vmatpush1.msra.mxu0 0.0
    %1215 = vmatprep.subr.mxu0 0.0
    %1216 = vmatpush1.msra.mxu0 0.0
    %1217 = vmatprep.subr.mxu0 0.0
    %1218 = vmatpush1.msra.mxu0 0.0
    %1219 = vmatprep.subr.mxu0 0.0
    %1220 = vmatpush1.msra.mxu0 0.0
    %1221 = vmatprep.subr.mxu0 0.0
    %1222 = vmatpush1.msra.mxu0 0.0
    %1223 = vmatprep.subr.mxu0 0.0
    %1224 = vmatpush1.msra.mxu0 0.0
    %1225 = vmatprep.subr.mxu0 0.0
    %1226 = vmatpush1.msra.mxu0 0.0
    %1227 = vmatprep.subr.mxu0 0.0
    %1228 = vmatpush1.msra.mxu0 0.0
    %1229 = vmatprep.subr.mxu0 0.0
    %1230 = vmatpush1.msra.mxu0 0.0
    %1231 = vmatprep.subr.mxu0 0.0
    %1232 = vmatpush1.msra.mxu0 0.0
    %1233 = vmatprep.subr.mxu0 0.0
    %1234 = vmatpush1.msra.mxu0 0.0
    %1235 = vmatprep.mubr.f32.mxu0 0.0
    %1236 = vmatmul.mubr.f32.gmra.mrb[0].mxu0 %v1169
    %v1237 = vpop.f32.mrb[0].mxu0
    %v1238 = vadd.f32 0.0, %v1237
    %v1239 = vpop.f32.mrb[0].mxu0
    %1240 = vdwg.mxu0
    %v1241 = vsel %vm1139, %v1157, 0
    %1243 = vmatprep.subr.mxu0 0.0
    %1244 = vmatpush1.msra.mxu0 %v1158
    %1245 = vmatprep.subr.mxu0 0.0
    %1246 = vmatpush1.msra.mxu0 %v1159
    %1247 = vmatprep.subr.mxu0 0.0
    %1248 = vmatpush1.msra.mxu0 %v1160
    %1249 = vmatprep.subr.mxu0 0.0
    %1250 = vmatpush1.msra.mxu0 %v1161
    %1251 = vmatprep.subr.mxu0 0.0
    %1252 = vmatpush1.msra.mxu0 0.0
    %1253 = vmatprep.subr.mxu0 0.0
    %1254 = vmatpush1.msra.mxu0 0.0
    %1255 = vmatprep.subr.mxu0 0.0
    %1256 = vmatpush1.msra.mxu0 0.0
    %1257 = vmatprep.subr.mxu0 0.0
    %1258 = vmatpush1.msra.mxu0 0.0
    %1259 = vmatprep.subr.mxu0 0.0
    %1260 = vmatpush1.msra.mxu0 0.0
    %1261 = vmatprep.subr.mxu0 0.0
    %1262 = vmatpush1.msra.mxu0 0.0
    %1263 = vmatprep.subr.mxu0 0.0
    %1264 = vmatpush1.msra.mxu0 0.0
    %1265 = vmatprep.subr.mxu0 0.0
    %1266 = vmatpush1.msra.mxu0 0.0
    %1267 = vmatprep.subr.mxu0 0.0
    %1268 = vmatpush1.msra.mxu0 0.0
    %1269 = vmatprep.subr.mxu0 0.0
    %1270 = vmatpush1.msra.mxu0 0.0
    %1271 = vmatprep.subr.mxu0 0.0
    %1272 = vmatpush1.msra.mxu0 0.0
    %1273 = vmatprep.subr.mxu0 0.0
    %1274 = vmatpush1.msra.mxu0 0.0
    %1275 = vmatprep.subr.mxu0 0.0
    %1276 = vmatpush1.msra.mxu0 0.0
    %1277 = vmatprep.subr.mxu0 0.0
    %1278 = vmatpush1.msra.mxu0 0.0
    %1279 = vmatprep.subr.mxu0 0.0
    %1280 = vmatpush1.msra.mxu0 0.0
    %1281 = vmatprep.subr.mxu0 0.0
    %1282 = vmatpush1.msra.mxu0 0.0
    %1283 = vmatprep.subr.mxu0 0.0
    %1284 = vmatpush1.msra.mxu0 0.0
    %1285 = vmatprep.subr.mxu0 0.0
    %1286 = vmatpush1.msra.mxu0 0.0
    %1287 = vmatprep.subr.mxu0 0.0
    %1288 = vmatpush1.msra.mxu0 0.0
    %1289 = vmatprep.subr.mxu0 0.0
    %1290 = vmatpush1.msra.mxu0 0.0
    %1291 = vmatprep.subr.mxu0 0.0
    %1292 = vmatpush1.msra.mxu0 0.0
    %1293 = vmatprep.subr.mxu0 0.0
    %1294 = vmatpush1.msra.mxu0 0.0
    %1295 = vmatprep.subr.mxu0 0.0
    %1296 = vmatpush1.msra.mxu0 0.0
    %1297 = vmatprep.subr.mxu0 0.0
    %1298 = vmatpush1.msra.mxu0 0.0
    %1299 = vmatprep.subr.mxu0 0.0
    %1300 = vmatpush1.msra.mxu0 0.0
    %1301 = vmatprep.subr.mxu0 0.0
    %1302 = vmatpush1.msra.mxu0 0.0
    %1303 = vmatprep.subr.mxu0 0.0
    %1304 = vmatpush1.msra.mxu0 0.0
    %1305 = vmatprep.subr.mxu0 0.0
    %1306 = vmatpush1.msra.mxu0 0.0
    %1307 = vmatprep.mubr.f32.mxu0 0.0
    %1308 = vmatmul.mubr.f32.gmra.mrb[0].mxu0 %v1241
    %v1309 = vpop.f32.mrb[0].mxu0
    %v1310 = vadd.f32 %v1238, %v1309
    %v1311 = vpop.f32.mrb[0].mxu0
    %1312 = vdwg.mxu0
    %s1313 = scalar_lea.vmem [#allocation9], 64
    %v1314 = vld [vmem:[%s1313] sm:$0xff]
    %v1315 = vld [vmem:[%s1313 + $0x8] sm:$0xff]
    %v1316 = vld [vmem:[%s1313 + $0x10] sm:$0xff]
    %v1317 = vld [vmem:[%s1313 + $0x18] sm:$0xff]
    %v1318 = vrot.slane %v1157, 2
    %v1319 = vsel %vm1139, %v1318, 0
    %1321 = vmatprep.subr.mxu0 0.0
    %1322 = vmatpush1.msra.mxu0 %v1314
    %1323 = vmatprep.subr.mxu0 0.0
    %1324 = vmatpush1.msra.mxu0 %v1315
    %1325 = vmatprep.subr.mxu0 0.0
    %1326 = vmatpush1.msra.mxu0 %v1316
    %1327 = vmatprep.subr.mxu0 0.0
    %1328 = vmatpush1.msra.mxu0 %v1317
    %1329 = vmatprep.subr.mxu0 0.0
    %1330 = vmatpush1.msra.mxu0 0.0
    %1331 = vmatprep.subr.mxu0 0.0
    %1332 = vmatpush1.msra.mxu0 0.0
    %1333 = vmatprep.subr.mxu0 0.0
    %1334 = vmatpush1.msra.mxu0 0.0
    %1335 = vmatprep.subr.mxu0 0.0
    %1336 = vmatpush1.msra.mxu0 0.0
    %1337 = vmatprep.subr.mxu0 0.0
    %1338 = vmatpush1.msra.mxu0 0.0
    %1339 = vmatprep.subr.mxu0 0.0
    %1340 = vmatpush1.msra.mxu0 0.0
    %1341 = vmatprep.subr.mxu0 0.0
    %1342 = vmatpush1.msra.mxu0 0.0
    %1343 = vmatprep.subr.mxu0 0.0
    %1344 = vmatpush1.msra.mxu0 0.0
    %1345 = vmatprep.subr.mxu0 0.0
    %1346 = vmatpush1.msra.mxu0 0.0
    %1347 = vmatprep.subr.mxu0 0.0
    %1348 = vmatpush1.msra.mxu0 0.0
    %1349 = vmatprep.subr.mxu0 0.0
    %1350 = vmatpush1.msra.mxu0 0.0
    %1351 = vmatprep.subr.mxu0 0.0
    %1352 = vmatpush1.msra.mxu0 0.0
    %1353 = vmatprep.subr.mxu0 0.0
    %1354 = vmatpush1.msra.mxu0 0.0
    %1355 = vmatprep.subr.mxu0 0.0
    %1356 = vmatpush1.msra.mxu0 0.0
    %1357 = vmatprep.subr.mxu0 0.0
    %1358 = vmatpush1.msra.mxu0 0.0
    %1359 = vmatprep.subr.mxu0 0.0
    %1360 = vmatpush1.msra.mxu0 0.0
    %1361 = vmatprep.subr.mxu0 0.0
    %1362 = vmatpush1.msra.mxu0 0.0
    %1363 = vmatprep.subr.mxu0 0.0
    %1364 = vmatpush1.msra.mxu0 0.0
    %1365 = vmatprep.subr.mxu0 0.0
    %1366 = vmatpush1.msra.mxu0 0.0
    %1367 = vmatprep.subr.mxu0 0.0
    %1368 = vmatpush1.msra.mxu0 0.0
    %1369 = vmatprep.subr.mxu0 0.0
    %1370 = vmatpush1.msra.mxu0 0.0
    %1371 = vmatprep.subr.mxu0 0.0
    %1372 = vmatpush1.msra.mxu0 0.0
    %1373 = vmatprep.subr.mxu0 0.0
    %1374 = vmatpush1.msra.mxu0 0.0
    %1375 = vmatprep.subr.mxu0 0.0
    %1376 = vmatpush1.msra.mxu0 0.0
    %1377 = vmatprep.subr.mxu0 0.0
    %1378 = vmatpush1.msra.mxu0 0.0
    %1379 = vmatprep.subr.mxu0 0.0
    %1380 = vmatpush1.msra.mxu0 0.0
    %1381 = vmatprep.subr.mxu0 0.0
    %1382 = vmatpush1.msra.mxu0 0.0
    %1383 = vmatprep.subr.mxu0 0.0
    %1384 = vmatpush1.msra.mxu0 0.0
    %1385 = vmatprep.mubr.f32.mxu0 0.0
    %1386 = vmatmul.mubr.f32.gmra.mrb[0].mxu0 %v1319
    %v1387 = vpop.f32.mrb[0].mxu0
    %v1388 = vadd.f32 0.0, %v1387
    %v1389 = vpop.f32.mrb[0].mxu0
    %1390 = vdwg.mxu0
    %v1391 = vadd.f32 %v1310, %v1388
    %v1392 = vld [vmem:[%s6] sm:$0x1]
    %v1394 = vlaneseq
    %v1395 = vshrl.u32 %v1394, 7
    %v1396 = vsub.s32 0, %v1395
    %v1397 = vrot.slane %v1392, %v1396
    %v1399 = vadd.f32 %v1391, %v1397
    %v1400 = vmax.f32 %v1399, 0.0
    %1402 = vrot.lane.b32.xlu0 %v1400, 112
    %v1403 = vpop.permute.xlu0 %1402
    %v1405 = vmax.f32 %v1400, %v1403
    %1406 = vrot.lane.b32.xlu0 %v1400, 96
    %v1407 = vpop.permute.xlu0 %1406
    %v1409 = vmax.f32 %v1405, %v1407
    %1410 = vrot.lane.b32.xlu0 %v1400, 80
    %v1411 = vpop.permute.xlu0 %1410
    %v1413 = vmax.f32 %v1409, %v1411
    %vm1414 = vcmask 130048
    %1415 = vst.msk [vmem:[#allocation5] sm:$0xff] %vm1414, 0.0
    %vm1416 = vcmask 123904
    %1417 = vst.msk [vmem:[#allocation5 + $0x2] sm:$0x3] %vm1416, %v1413
    %vm1418 = vcmask 128004
    %1419 = vst.msk [vmem:[#allocation5 + $0x2] sm:$0x30] %vm1418, %v1413
    %v1420 = vld [vmem:[#allocation5] ss:$4 sm:$0x3]
    %s1421 = scalar_lea.vmem [#allocation5], 1
    %v1422 = vld [vmem:[%s1421] ss:$4 sm:$0x3]
    %s1423 = scalar_lea.vmem [#allocation5], 2
    %v1424 = vld [vmem:[%s1423] ss:$4 sm:$0x3]
    %s1425 = scalar_lea.vmem [#allocation5], 3
    %v1426 = vld [vmem:[%s1425] ss:$4 sm:$0x3]
    %v1427 = vmax.f32 %v1420, %v1422
    %v1428 = vmax.f32 %v1427, %v1424
    %v1429 = vmax.f32 %v1428, %v1426
    %v1430 = vld [vmem:[%s7] sm:$0xff]
    %v1431 = vld [vmem:[%s7 + $0x8] sm:$0xff]
    %v1432 = vld [vmem:[%s8] sm:$0x1]
    %v1434 = vlaneseq
    %v1435 = vshrl.u32 %v1434, 7
    %v1436 = vsub.s32 0, %v1435
    %v1437 = vrot.slane %v1432, %v1436
    %v1440 = vsel %vm1414, %v1429, 0
    %1442 = vmatprep.subr.mxu0 0.0
    %1443 = vmatpush1.msra.mxu0 %v1430
    %1444 = vmatprep.subr.mxu0 0.0
    %1445 = vmatpush1.msra.mxu0 %v1431
    %1446 = vmatprep.subr.mxu0 0.0
    %1447 = vmatpush1.msra.mxu0 0.0
    %1448 = vmatprep.subr.mxu0 0.0
    %1449 = vmatpush1.msra.mxu0 0.0
    %1450 = vmatprep.subr.mxu0 0.0
    %1451 = vmatpush1.msra.mxu0 0.0
    %1452 = vmatprep.subr.mxu0 0.0
    %1453 = vmatpush1.msra.mxu0 0.0
    %1454 = vmatprep.subr.mxu0 0.0
    %1455 = vmatpush1.msra.mxu0 0.0
    %1456 = vmatprep.subr.mxu0 0.0
    %1457 = vmatpush1.msra.mxu0 0.0
    %1458 = vmatprep.subr.mxu0 0.0
    %1459 = vmatpush1.msra.mxu0 0.0
    %1460 = vmatprep.subr.mxu0 0.0
    %1461 = vmatpush1.msra.mxu0 0.0
    %1462 = vmatprep.subr.mxu0 0.0
    %1463 = vmatpush1.msra.mxu0 0.0
    %1464 = vmatprep.subr.mxu0 0.0
    %1465 = vmatpush1.msra.mxu0 0.0
    %1466 = vmatprep.subr.mxu0 0.0
    %1467 = vmatpush1.msra.mxu0 0.0
    %1468 = vmatprep.subr.mxu0 0.0
    %1469 = vmatpush1.msra.mxu0 0.0
    %1470 = vmatprep.subr.mxu0 0.0
    %1471 = vmatpush1.msra.mxu0 0.0
    %1472 = vmatprep.subr.mxu0 0.0
    %1473 = vmatpush1.msra.mxu0 0.0
    %1474 = vmatprep.subr.mxu0 0.0
    %1475 = vmatpush1.msra.mxu0 0.0
    %1476 = vmatprep.subr.mxu0 0.0
    %1477 = vmatpush1.msra.mxu0 0.0
    %1478 = vmatprep.subr.mxu0 0.0
    %1479 = vmatpush1.msra.mxu0 0.0
    %1480 = vmatprep.subr.mxu0 0.0
    %1481 = vmatpush1.msra.mxu0 0.0
    %1482 = vmatprep.subr.mxu0 0.0
    %1483 = vmatpush1.msra.mxu0 0.0
    %1484 = vmatprep.subr.mxu0 0.0
    %1485 = vmatpush1.msra.mxu0 0.0
    %1486 = vmatprep.subr.mxu0 0.0
    %1487 = vmatpush1.msra.mxu0 0.0
    %1488 = vmatprep.subr.mxu0 0.0
    %1489 = vmatpush1.msra.mxu0 0.0
    %1490 = vmatprep.subr.mxu0 0.0
    %1491 = vmatpush1.msra.mxu0 0.0
    %1492 = vmatprep.subr.mxu0 0.0
    %1493 = vmatpush1.msra.mxu0 0.0
    %1494 = vmatprep.subr.mxu0 0.0
    %1495 = vmatpush1.msra.mxu0 0.0
    %1496 = vmatprep.subr.mxu0 0.0
    %1497 = vmatpush1.msra.mxu0 0.0
    %1498 = vmatprep.subr.mxu0 0.0
    %1499 = vmatpush1.msra.mxu0 0.0
    %1500 = vmatprep.subr.mxu0 0.0
    %1501 = vmatpush1.msra.mxu0 0.0
    %1502 = vmatprep.subr.mxu0 0.0
    %1503 = vmatpush1.msra.mxu0 0.0
    %1504 = vmatprep.subr.mxu0 0.0
    %1505 = vmatpush1.msra.mxu0 0.0
    %1506 = vmatprep.mubr.f32.mxu0 0.0
    %1507 = vmatmul.mubr.f32.gmra.mrb[0].mxu0 %v1440
    %v1508 = vpop.f32.mrb[0].mxu0
    %v1509 = vadd.f32 %v1437, %v1508
    %v1510 = vpop.f32.mrb[0].mxu0
    %1511 = vdwg.mxu0
    %vm1512 = vcmask 74752
    %1513 = vst.msk [vmem:[#allocation11] sm:$0x3] %vm1512, %v1509
    // Predicated region
    $region46: #{forward.1} parent=1 // pred_check
      _
    $region47: #{forward.1} parent=1 // pred_check_branch
      %1515 = sbr.rel (0) target = $region49
    $region48: #{forward.1} parent=1 // pred_region
      %s1517 = ssub.s32 32, 32
      %1518 = vsyncadd [#allocation8], %s1517
      %s1520 = sshll.u32 [#allocation11], 4
      %s1521 = int_to_ptr.vmem [resolvable:$true] %s1520
      %1523 = dma.vmem_to_hbm [thread:$0]  %s1521, 32, %s9, [#allocation8]
    $region49: #{forward.1} parent=1 // pred_fallthru
      _
    // Predicated region
    $region50: #{forward.1} parent=1 // pred_check
      _
    $region51: #{forward.1} parent=1 // pred_check_branch
      %1525 = sbr.rel (0) target = $region53
    $region52: #{forward.1} parent=1 // pred_region
      %1526 = dma.done [#allocation8], 32
    $region53: #{forward.1} parent=1 // pred_fallthru
      _
    %1527 = vsyncpa [#allocation7], 1
    %1528 = vsyncpa [#allocation10], 1
    %1529 = vsyncpa [#allocation8], 1

</llo_original>
